<compile_context>
chip_gen: v7x
topology: tpu7x:2x2x1
jax: 0.10.0
libtpu: 0.0.40
codegen_flags: <defaults>
</compile_context>

<pallas_src>
import functools

import jax
import jax.numpy as jnp
from jax.experimental import pallas as pl
from jax.experimental.pallas import tpu as pltpu


def _bilstm_last_step_kernel(x_ref, wih_ref, whh_f_ref, b_ref, out_ref, *, H, T):
    """x_ref: (TN*T, F) bf16, rows ordered walk-major / time-minor.
    wih_ref: (F, 8H) bf16 = [W_ih_fwd | W_ih_bwd] pre-transposed.
    whh_f_ref: (H, 4H) bf16. b_ref: (1, 8H) f32 = b_ih + b_hh (both directions).
    out_ref: (TN, 2H) f32."""
    TN = out_ref.shape[0]

    # Hoisted input projection for BOTH directions: one large MXU matmul for the
    # whole tile, bias folded in, so only h @ W_hh stays on the recurrent path.
    z = jnp.dot(x_ref[...], wih_ref[...],
                preferred_element_type=jnp.float32) + b_ref[...]    # (TN*T, 8H) f32
    z = z.reshape(TN, T, 8 * H)

    whh_f = whh_f_ref[...]                                           # (H, 4H) bf16

    # --- Forward direction: full recurrence, unrolled over the static walk length.
    h = jnp.zeros((TN, H), jnp.float32)
    c = jnp.zeros((TN, H), jnp.float32)
    for t in range(T):                      # static Python unroll
        gates = z[:, t, 0:4 * H] + jnp.dot(h.astype(jnp.bfloat16), whh_f,
                                           preferred_element_type=jnp.float32)
        i = jax.nn.sigmoid(gates[:, 0 * H:1 * H])
        f = jax.nn.sigmoid(gates[:, 1 * H:2 * H])
        g = jnp.tanh(gates[:, 2 * H:3 * H])
        o = jax.nn.sigmoid(gates[:, 3 * H:4 * H])
        c = f * c + i * g
        h = o * jnp.tanh(c)
    h_fwd = h

    # --- Backward direction at the last timestep: one cell step from zero state.
    # h0 == 0 -> the h @ W_hh_bwd term vanishes; c0 == 0 -> forget gate irrelevant.
    zb = z[:, T - 1, 4 * H:8 * H]                                    # (TN, 4H)
    i_b = jax.nn.sigmoid(zb[:, 0 * H:1 * H])
    g_b = jnp.tanh(zb[:, 2 * H:3 * H])
    o_b = jax.nn.sigmoid(zb[:, 3 * H:4 * H])
    h_bwd = o_b * jnp.tanh(i_b * g_b)

    # Single lane-dense store.
    out_ref[...] = jnp.concatenate([h_fwd, h_bwd], axis=-1)


def feature_encoder_forward(X, params, *, row_tile=256):
    """X: [batch, n_walk, len_walk, feat_dim] float32 -> [batch, n_walk, 2H] float32."""
    batch, n_walk, T, F = X.shape
    H = params["H"]
    N = batch * n_walk

    # Row tile: multiple of 8 (sublane granule); 256 sized for v7x's smaller VMEM.
    TN = max(8, min(row_tile, pl.cdiv(N, 8) * 8))
    TN = (TN // 8) * 8
    N_pad = pl.cdiv(N, TN) * TN

    x = X.reshape(N, T, F)
    if N_pad != N:
        x = jnp.pad(x, ((0, N_pad - N), (0, 0), (0, 0)))
    # Contiguous [N*T, F] view (walk-major, time-minor) -- no HBM transpose pass.
    x2d = x.reshape(N_pad * T, F).astype(jnp.bfloat16)

    # Fuse both directions' input projections; fold b_ih + b_hh once.
    wih = jnp.concatenate([params["wih_f"], params["wih_b"]], axis=1).astype(jnp.bfloat16)
    b = jnp.concatenate([params["b_f"], params["b_b"]], axis=1)           # (1, 8H) f32
    whh_f = params["whh_f"].astype(jnp.bfloat16)
    # params["whh_b"] is mathematically irrelevant to the last-timestep output
    # (backward direction's first reverse step starts from h0 == 0), so it is not
    # passed to the kernel at all.

    grid = (N_pad // TN,)

    # Explicit VMEM budget (v7x: 64 MiB physical / 32 MiB scoped default).
    tile_bytes = (2 * (TN * T * F * 2)            # double-buffered bf16 X tile
                  + 2 * (TN * 2 * H * 4)          # double-buffered f32 out tile
                  + TN * T * 8 * H * 4            # Z intermediate
                  + 2 * ((F * 8 * H + H * 4 * H) * 2 + 8 * H * 4))   # weights + bias
    vmem_limit = int(min(max(4 * tile_bytes, 8 * 1024 * 1024), 32 * 1024 * 1024))

    out = pl.pallas_call(
        functools.partial(_bilstm_last_step_kernel, H=H, T=T),
        out_shape=jax.ShapeDtypeStruct((N_pad, 2 * H), jnp.float32),
        grid=grid,
        in_specs=[
            pl.BlockSpec((TN * T, F), lambda i: (i, 0)),     # X tile (streamed)
            pl.BlockSpec((F, 8 * H), lambda i: (0, 0)),      # W_ih fwd|bwd (resident)
            pl.BlockSpec((H, 4 * H), lambda i: (0, 0)),      # W_hh fwd (resident)
            pl.BlockSpec((1, 8 * H), lambda i: (0, 0)),      # combined bias (resident)
        ],
        out_specs=pl.BlockSpec((TN, 2 * H), lambda i: (i, 0)),
        compiler_params=pltpu.CompilerParams(
            dimension_semantics=("parallel",),   # v7x: shard row tiles over both TCs
            vmem_limit_bytes=vmem_limit),
    )(x2d, wih, whh_f, b)

    # nn.Dropout(p=0.1) is identity at inference time.
    return out[:N].reshape(batch, n_walk, 2 * H)


def init_params(key, in_features, hidden_features):
    """Deterministic init matching nn.LSTM's U(-1/sqrt(H), 1/sqrt(H)) shapes."""
    H = hidden_features // 2
    bound = 1.0 / (H ** 0.5)
    ks = jax.random.split(key, 9)

    def u(k, shape):
        return jax.random.uniform(k, shape, jnp.float32, minval=-bound, maxval=bound)

    return {
        "H": H,
        # forward direction: weight_ih [4H, F] / weight_hh [4H, H] pre-transposed
        "wih_f": u(ks[0], (in_features, 4 * H)),
        "whh_f": u(ks[1], (H, 4 * H)),
        "b_f": u(ks[2], (1, 4 * H)) + u(ks[3], (1, 4 * H)),   # b_ih + b_hh
        # backward (reverse) direction
        "wih_b": u(ks[4], (in_features, 4 * H)),
        "whh_b": u(ks[5], (H, 4 * H)),                         # unused for last-step output
        "b_b": u(ks[6], (1, 4 * H)) + u(ks[7], (1, 4 * H)),
    }


if __name__ == "__main__":
    in_features = 16
    hidden_features = 32          # model_dim = 2 * (hidden_features // 2) = 32
    batch, n_walk, len_walk = 2, 4, 8

    key = jax.random.PRNGKey(0)
    kx, kp = jax.random.split(key)
    X = jax.random.normal(kx, (batch, n_walk, len_walk, in_features), jnp.float32)
    params = init_params(kp, in_features, hidden_features)

    out = feature_encoder_forward(X, params)
    out = jax.block_until_ready(out)
    assert out.shape == (batch, n_walk, hidden_features)
    assert out.dtype == jnp.float32
    print("KERNEL_OK")
</pallas_src>

<mosaic_0001>
module attributes {stable_mosaic.version = 11 : i64} {
  func.func @_bilstm_last_step_kernel(%arg0: i32, %arg1: memref<64x16xbf16, #tpu.memory_space<vmem>>, %arg2: memref<16x128xbf16, #tpu.memory_space<vmem>>, %arg3: memref<16x64xbf16, #tpu.memory_space<vmem>>, %arg4: memref<1x128xf32, #tpu.memory_space<vmem>>, %arg5: memref<8x32xf32, #tpu.memory_space<vmem>>) attributes {dimension_semantics = [#tpu.dimension_semantics<parallel>], iteration_bounds = array<i64: 1>, scalar_prefetch = 0 : i64, scratch_operands = 0 : i64, tpu.core_type = #tpu.core_type<tc>, window_params = [{transform_indices = @transform_0, window_bounds = array<i64: 64, 16>}, {pipeline_mode = #tpu.pipeline_mode<synchronous>, transform_indices = @transform_1, window_bounds = array<i64: 16, 128>}, {pipeline_mode = #tpu.pipeline_mode<synchronous>, transform_indices = @transform_2, window_bounds = array<i64: 16, 64>}, {pipeline_mode = #tpu.pipeline_mode<synchronous>, transform_indices = @transform_3, window_bounds = array<i64: 1, 128>}, {transform_indices = @transform_4, window_bounds = array<i64: 8, 32>}]} {
    %c0 = arith.constant 0 : index
    %c0_0 = arith.constant 0 : index
    %0 = vector.load %arg1[%c0, %c0_0] : memref<64x16xbf16, #tpu.memory_space<vmem>>, vector<64x16xbf16>
    %c0_1 = arith.constant 0 : index
    %c0_2 = arith.constant 0 : index
    %1 = vector.load %arg2[%c0_1, %c0_2] : memref<16x128xbf16, #tpu.memory_space<vmem>>, vector<16x128xbf16>
    %cst = arith.constant dense<0.000000e+00> : vector<64x128xf32>
    %2 = tpu.matmul %0, %1, %cst {dimension_numbers = #tpu.dot_dimension_numbers<[1], [0], [0], [1], [0, 0, 1, 1], [], []>} : vector<64x16xbf16>, vector<16x128xbf16>, vector<64x128xf32> -> vector<64x128xf32>
    %c0_3 = arith.constant 0 : index
    %c0_4 = arith.constant 0 : index
    %3 = vector.load %arg4[%c0_3, %c0_4] : memref<1x128xf32, #tpu.memory_space<vmem>>, vector<1x128xf32>
    %4 = vector.broadcast %3 : vector<1x128xf32> to vector<64x128xf32>
    %5 = arith.addf %2, %4 : vector<64x128xf32>
    %6 = vector.shape_cast %5 : vector<64x128xf32> to vector<8x8x128xf32>
    %c0_5 = arith.constant 0 : index
    %c0_6 = arith.constant 0 : index
    %7 = vector.load %arg3[%c0_5, %c0_6] : memref<16x64xbf16, #tpu.memory_space<vmem>>, vector<16x64xbf16>
    %cst_7 = arith.constant 0.000000e+00 : f32
    %8 = vector.broadcast %cst_7 : f32 to vector<8x16xf32>
    %cst_8 = arith.constant 0.000000e+00 : f32
    %9 = vector.broadcast %cst_8 : f32 to vector<8x16xf32>
    %10 = vector.extract_strided_slice %6 {offsets = [0, 0, 0], sizes = [8, 1, 64], strides = [1, 1, 1]} : vector<8x8x128xf32> to vector<8x1x64xf32>
    %11 = vector.shape_cast %10 : vector<8x1x64xf32> to vector<8x64xf32>
    %12 = arith.truncf %8 : vector<8x16xf32> to vector<8x16xbf16>
    %cst_9 = arith.constant dense<0.000000e+00> : vector<8x64xf32>
    %13 = tpu.matmul %12, %7, %cst_9 {dimension_numbers = #tpu.dot_dimension_numbers<[1], [0], [0], [1], [0, 0, 1, 1], [], []>} : vector<8x16xbf16>, vector<16x64xbf16>, vector<8x64xf32> -> vector<8x64xf32>
    %14 = arith.addf %11, %13 : vector<8x64xf32>
    %15 = vector.extract_strided_slice %14 {offsets = [0, 0], sizes = [8, 16], strides = [1, 1]} : vector<8x64xf32> to vector<8x16xf32>
    %16 = arith.negf %15 : vector<8x16xf32>
    %17 = math.exp %16 : vector<8x16xf32>
    %cst_10 = arith.constant 1.000000e+00 : f32
    %18 = vector.broadcast %cst_10 : f32 to vector<8x16xf32>
    %19 = arith.addf %18, %17 : vector<8x16xf32>
    %20 = arith.divf %18, %19 : vector<8x16xf32>
    %21 = vector.extract_strided_slice %14 {offsets = [0, 16], sizes = [8, 16], strides = [1, 1]} : vector<8x64xf32> to vector<8x16xf32>
    %22 = arith.negf %21 : vector<8x16xf32>
    %23 = math.exp %22 : vector<8x16xf32>
    %cst_11 = arith.constant 1.000000e+00 : f32
    %24 = vector.broadcast %cst_11 : f32 to vector<8x16xf32>
    %25 = arith.addf %24, %23 : vector<8x16xf32>
    %26 = arith.divf %24, %25 : vector<8x16xf32>
    %27 = vector.extract_strided_slice %14 {offsets = [0, 32], sizes = [8, 16], strides = [1, 1]} : vector<8x64xf32> to vector<8x16xf32>
    %28 = math.tanh %27 : vector<8x16xf32>
    %29 = vector.extract_strided_slice %14 {offsets = [0, 48], sizes = [8, 16], strides = [1, 1]} : vector<8x64xf32> to vector<8x16xf32>
    %30 = arith.negf %29 : vector<8x16xf32>
    %31 = math.exp %30 : vector<8x16xf32>
    %cst_12 = arith.constant 1.000000e+00 : f32
    %32 = vector.broadcast %cst_12 : f32 to vector<8x16xf32>
    %33 = arith.addf %32, %31 : vector<8x16xf32>
    %34 = arith.divf %32, %33 : vector<8x16xf32>
    %35 = arith.mulf %26, %9 : vector<8x16xf32>
    %36 = arith.mulf %20, %28 : vector<8x16xf32>
    %37 = arith.addf %35, %36 : vector<8x16xf32>
    %38 = math.tanh %37 : vector<8x16xf32>
    %39 = arith.mulf %34, %38 : vector<8x16xf32>
    %40 = vector.extract_strided_slice %6 {offsets = [0, 1, 0], sizes = [8, 1, 64], strides = [1, 1, 1]} : vector<8x8x128xf32> to vector<8x1x64xf32>
    %41 = vector.shape_cast %40 : vector<8x1x64xf32> to vector<8x64xf32>
    %42 = arith.truncf %39 : vector<8x16xf32> to vector<8x16xbf16>
    %cst_13 = arith.constant dense<0.000000e+00> : vector<8x64xf32>
    %43 = tpu.matmul %42, %7, %cst_13 {dimension_numbers = #tpu.dot_dimension_numbers<[1], [0], [0], [1], [0, 0, 1, 1], [], []>} : vector<8x16xbf16>, vector<16x64xbf16>, vector<8x64xf32> -> vector<8x64xf32>
    %44 = arith.addf %41, %43 : vector<8x64xf32>
    %45 = vector.extract_strided_slice %44 {offsets = [0, 0], sizes = [8, 16], strides = [1, 1]} : vector<8x64xf32> to vector<8x16xf32>
    %46 = arith.negf %45 : vector<8x16xf32>
    %47 = math.exp %46 : vector<8x16xf32>
    %cst_14 = arith.constant 1.000000e+00 : f32
    %48 = vector.broadcast %cst_14 : f32 to vector<8x16xf32>
    %49 = arith.addf %48, %47 : vector<8x16xf32>
    %50 = arith.divf %48, %49 : vector<8x16xf32>
    %51 = vector.extract_strided_slice %44 {offsets = [0, 16], sizes = [8, 16], strides = [1, 1]} : vector<8x64xf32> to vector<8x16xf32>
    %52 = arith.negf %51 : vector<8x16xf32>
    %53 = math.exp %52 : vector<8x16xf32>
    %cst_15 = arith.constant 1.000000e+00 : f32
    %54 = vector.broadcast %cst_15 : f32 to vector<8x16xf32>
    %55 = arith.addf %54, %53 : vector<8x16xf32>
    %56 = arith.divf %54, %55 : vector<8x16xf32>
    %57 = vector.extract_strided_slice %44 {offsets = [0, 32], sizes = [8, 16], strides = [1, 1]} : vector<8x64xf32> to vector<8x16xf32>
    %58 = math.tanh %57 : vector<8x16xf32>
    %59 = vector.extract_strided_slice %44 {offsets = [0, 48], sizes = [8, 16], strides = [1, 1]} : vector<8x64xf32> to vector<8x16xf32>
    %60 = arith.negf %59 : vector<8x16xf32>
    %61 = math.exp %60 : vector<8x16xf32>
    %cst_16 = arith.constant 1.000000e+00 : f32
    %62 = vector.broadcast %cst_16 : f32 to vector<8x16xf32>
    %63 = arith.addf %62, %61 : vector<8x16xf32>
    %64 = arith.divf %62, %63 : vector<8x16xf32>
    %65 = arith.mulf %56, %37 : vector<8x16xf32>
    %66 = arith.mulf %50, %58 : vector<8x16xf32>
    %67 = arith.addf %65, %66 : vector<8x16xf32>
    %68 = math.tanh %67 : vector<8x16xf32>
    %69 = arith.mulf %64, %68 : vector<8x16xf32>
    %70 = vector.extract_strided_slice %6 {offsets = [0, 2, 0], sizes = [8, 1, 64], strides = [1, 1, 1]} : vector<8x8x128xf32> to vector<8x1x64xf32>
    %71 = vector.shape_cast %70 : vector<8x1x64xf32> to vector<8x64xf32>
    %72 = arith.truncf %69 : vector<8x16xf32> to vector<8x16xbf16>
    %cst_17 = arith.constant dense<0.000000e+00> : vector<8x64xf32>
    %73 = tpu.matmul %72, %7, %cst_17 {dimension_numbers = #tpu.dot_dimension_numbers<[1], [0], [0], [1], [0, 0, 1, 1], [], []>} : vector<8x16xbf16>, vector<16x64xbf16>, vector<8x64xf32> -> vector<8x64xf32>
    %74 = arith.addf %71, %73 : vector<8x64xf32>
    %75 = vector.extract_strided_slice %74 {offsets = [0, 0], sizes = [8, 16], strides = [1, 1]} : vector<8x64xf32> to vector<8x16xf32>
    %76 = arith.negf %75 : vector<8x16xf32>
    %77 = math.exp %76 : vector<8x16xf32>
    %cst_18 = arith.constant 1.000000e+00 : f32
    %78 = vector.broadcast %cst_18 : f32 to vector<8x16xf32>
    %79 = arith.addf %78, %77 : vector<8x16xf32>
    %80 = arith.divf %78, %79 : vector<8x16xf32>
    %81 = vector.extract_strided_slice %74 {offsets = [0, 16], sizes = [8, 16], strides = [1, 1]} : vector<8x64xf32> to vector<8x16xf32>
    %82 = arith.negf %81 : vector<8x16xf32>
    %83 = math.exp %82 : vector<8x16xf32>
    %cst_19 = arith.constant 1.000000e+00 : f32
    %84 = vector.broadcast %cst_19 : f32 to vector<8x16xf32>
    %85 = arith.addf %84, %83 : vector<8x16xf32>
    %86 = arith.divf %84, %85 : vector<8x16xf32>
    %87 = vector.extract_strided_slice %74 {offsets = [0, 32], sizes = [8, 16], strides = [1, 1]} : vector<8x64xf32> to vector<8x16xf32>
    %88 = math.tanh %87 : vector<8x16xf32>
    %89 = vector.extract_strided_slice %74 {offsets = [0, 48], sizes = [8, 16], strides = [1, 1]} : vector<8x64xf32> to vector<8x16xf32>
    %90 = arith.negf %89 : vector<8x16xf32>
    %91 = math.exp %90 : vector<8x16xf32>
    %cst_20 = arith.constant 1.000000e+00 : f32
    %92 = vector.broadcast %cst_20 : f32 to vector<8x16xf32>
    %93 = arith.addf %92, %91 : vector<8x16xf32>
    %94 = arith.divf %92, %93 : vector<8x16xf32>
    %95 = arith.mulf %86, %67 : vector<8x16xf32>
    %96 = arith.mulf %80, %88 : vector<8x16xf32>
    %97 = arith.addf %95, %96 : vector<8x16xf32>
    %98 = math.tanh %97 : vector<8x16xf32>
    %99 = arith.mulf %94, %98 : vector<8x16xf32>
    %100 = vector.extract_strided_slice %6 {offsets = [0, 3, 0], sizes = [8, 1, 64], strides = [1, 1, 1]} : vector<8x8x128xf32> to vector<8x1x64xf32>
    %101 = vector.shape_cast %100 : vector<8x1x64xf32> to vector<8x64xf32>
    %102 = arith.truncf %99 : vector<8x16xf32> to vector<8x16xbf16>
    %cst_21 = arith.constant dense<0.000000e+00> : vector<8x64xf32>
    %103 = tpu.matmul %102, %7, %cst_21 {dimension_numbers = #tpu.dot_dimension_numbers<[1], [0], [0], [1], [0, 0, 1, 1], [], []>} : vector<8x16xbf16>, vector<16x64xbf16>, vector<8x64xf32> -> vector<8x64xf32>
    %104 = arith.addf %101, %103 : vector<8x64xf32>
    %105 = vector.extract_strided_slice %104 {offsets = [0, 0], sizes = [8, 16], strides = [1, 1]} : vector<8x64xf32> to vector<8x16xf32>
    %106 = arith.negf %105 : vector<8x16xf32>
    %107 = math.exp %106 : vector<8x16xf32>
    %cst_22 = arith.constant 1.000000e+00 : f32
    %108 = vector.broadcast %cst_22 : f32 to vector<8x16xf32>
    %109 = arith.addf %108, %107 : vector<8x16xf32>
    %110 = arith.divf %108, %109 : vector<8x16xf32>
    %111 = vector.extract_strided_slice %104 {offsets = [0, 16], sizes = [8, 16], strides = [1, 1]} : vector<8x64xf32> to vector<8x16xf32>
    %112 = arith.negf %111 : vector<8x16xf32>
    %113 = math.exp %112 : vector<8x16xf32>
    %cst_23 = arith.constant 1.000000e+00 : f32
    %114 = vector.broadcast %cst_23 : f32 to vector<8x16xf32>
    %115 = arith.addf %114, %113 : vector<8x16xf32>
    %116 = arith.divf %114, %115 : vector<8x16xf32>
    %117 = vector.extract_strided_slice %104 {offsets = [0, 32], sizes = [8, 16], strides = [1, 1]} : vector<8x64xf32> to vector<8x16xf32>
    %118 = math.tanh %117 : vector<8x16xf32>
    %119 = vector.extract_strided_slice %104 {offsets = [0, 48], sizes = [8, 16], strides = [1, 1]} : vector<8x64xf32> to vector<8x16xf32>
    %120 = arith.negf %119 : vector<8x16xf32>
    %121 = math.exp %120 : vector<8x16xf32>
    %cst_24 = arith.constant 1.000000e+00 : f32
    %122 = vector.broadcast %cst_24 : f32 to vector<8x16xf32>
    %123 = arith.addf %122, %121 : vector<8x16xf32>
    %124 = arith.divf %122, %123 : vector<8x16xf32>
    %125 = arith.mulf %116, %97 : vector<8x16xf32>
    %126 = arith.mulf %110, %118 : vector<8x16xf32>
    %127 = arith.addf %125, %126 : vector<8x16xf32>
    %128 = math.tanh %127 : vector<8x16xf32>
    %129 = arith.mulf %124, %128 : vector<8x16xf32>
    %130 = vector.extract_strided_slice %6 {offsets = [0, 4, 0], sizes = [8, 1, 64], strides = [1, 1, 1]} : vector<8x8x128xf32> to vector<8x1x64xf32>
    %131 = vector.shape_cast %130 : vector<8x1x64xf32> to vector<8x64xf32>
    %132 = arith.truncf %129 : vector<8x16xf32> to vector<8x16xbf16>
    %cst_25 = arith.constant dense<0.000000e+00> : vector<8x64xf32>
    %133 = tpu.matmul %132, %7, %cst_25 {dimension_numbers = #tpu.dot_dimension_numbers<[1], [0], [0], [1], [0, 0, 1, 1], [], []>} : vector<8x16xbf16>, vector<16x64xbf16>, vector<8x64xf32> -> vector<8x64xf32>
    %134 = arith.addf %131, %133 : vector<8x64xf32>
    %135 = vector.extract_strided_slice %134 {offsets = [0, 0], sizes = [8, 16], strides = [1, 1]} : vector<8x64xf32> to vector<8x16xf32>
    %136 = arith.negf %135 : vector<8x16xf32>
    %137 = math.exp %136 : vector<8x16xf32>
    %cst_26 = arith.constant 1.000000e+00 : f32
    %138 = vector.broadcast %cst_26 : f32 to vector<8x16xf32>
    %139 = arith.addf %138, %137 : vector<8x16xf32>
    %140 = arith.divf %138, %139 : vector<8x16xf32>
    %141 = vector.extract_strided_slice %134 {offsets = [0, 16], sizes = [8, 16], strides = [1, 1]} : vector<8x64xf32> to vector<8x16xf32>
    %142 = arith.negf %141 : vector<8x16xf32>
    %143 = math.exp %142 : vector<8x16xf32>
    %cst_27 = arith.constant 1.000000e+00 : f32
    %144 = vector.broadcast %cst_27 : f32 to vector<8x16xf32>
    %145 = arith.addf %144, %143 : vector<8x16xf32>
    %146 = arith.divf %144, %145 : vector<8x16xf32>
    %147 = vector.extract_strided_slice %134 {offsets = [0, 32], sizes = [8, 16], strides = [1, 1]} : vector<8x64xf32> to vector<8x16xf32>
    %148 = math.tanh %147 : vector<8x16xf32>
    %149 = vector.extract_strided_slice %134 {offsets = [0, 48], sizes = [8, 16], strides = [1, 1]} : vector<8x64xf32> to vector<8x16xf32>
    %150 = arith.negf %149 : vector<8x16xf32>
    %151 = math.exp %150 : vector<8x16xf32>
    %cst_28 = arith.constant 1.000000e+00 : f32
    %152 = vector.broadcast %cst_28 : f32 to vector<8x16xf32>
    %153 = arith.addf %152, %151 : vector<8x16xf32>
    %154 = arith.divf %152, %153 : vector<8x16xf32>
    %155 = arith.mulf %146, %127 : vector<8x16xf32>
    %156 = arith.mulf %140, %148 : vector<8x16xf32>
    %157 = arith.addf %155, %156 : vector<8x16xf32>
    %158 = math.tanh %157 : vector<8x16xf32>
    %159 = arith.mulf %154, %158 : vector<8x16xf32>
    %160 = vector.extract_strided_slice %6 {offsets = [0, 5, 0], sizes = [8, 1, 64], strides = [1, 1, 1]} : vector<8x8x128xf32> to vector<8x1x64xf32>
    %161 = vector.shape_cast %160 : vector<8x1x64xf32> to vector<8x64xf32>
    %162 = arith.truncf %159 : vector<8x16xf32> to vector<8x16xbf16>
    %cst_29 = arith.constant dense<0.000000e+00> : vector<8x64xf32>
    %163 = tpu.matmul %162, %7, %cst_29 {dimension_numbers = #tpu.dot_dimension_numbers<[1], [0], [0], [1], [0, 0, 1, 1], [], []>} : vector<8x16xbf16>, vector<16x64xbf16>, vector<8x64xf32> -> vector<8x64xf32>
    %164 = arith.addf %161, %163 : vector<8x64xf32>
    %165 = vector.extract_strided_slice %164 {offsets = [0, 0], sizes = [8, 16], strides = [1, 1]} : vector<8x64xf32> to vector<8x16xf32>
    %166 = arith.negf %165 : vector<8x16xf32>
    %167 = math.exp %166 : vector<8x16xf32>
    %cst_30 = arith.constant 1.000000e+00 : f32
    %168 = vector.broadcast %cst_30 : f32 to vector<8x16xf32>
    %169 = arith.addf %168, %167 : vector<8x16xf32>
    %170 = arith.divf %168, %169 : vector<8x16xf32>
    %171 = vector.extract_strided_slice %164 {offsets = [0, 16], sizes = [8, 16], strides = [1, 1]} : vector<8x64xf32> to vector<8x16xf32>
    %172 = arith.negf %171 : vector<8x16xf32>
    %173 = math.exp %172 : vector<8x16xf32>
    %cst_31 = arith.constant 1.000000e+00 : f32
    %174 = vector.broadcast %cst_31 : f32 to vector<8x16xf32>
    %175 = arith.addf %174, %173 : vector<8x16xf32>
    %176 = arith.divf %174, %175 : vector<8x16xf32>
    %177 = vector.extract_strided_slice %164 {offsets = [0, 32], sizes = [8, 16], strides = [1, 1]} : vector<8x64xf32> to vector<8x16xf32>
    %178 = math.tanh %177 : vector<8x16xf32>
    %179 = vector.extract_strided_slice %164 {offsets = [0, 48], sizes = [8, 16], strides = [1, 1]} : vector<8x64xf32> to vector<8x16xf32>
    %180 = arith.negf %179 : vector<8x16xf32>
    %181 = math.exp %180 : vector<8x16xf32>
    %cst_32 = arith.constant 1.000000e+00 : f32
    %182 = vector.broadcast %cst_32 : f32 to vector<8x16xf32>
    %183 = arith.addf %182, %181 : vector<8x16xf32>
    %184 = arith.divf %182, %183 : vector<8x16xf32>
    %185 = arith.mulf %176, %157 : vector<8x16xf32>
    %186 = arith.mulf %170, %178 : vector<8x16xf32>
    %187 = arith.addf %185, %186 : vector<8x16xf32>
    %188 = math.tanh %187 : vector<8x16xf32>
    %189 = arith.mulf %184, %188 : vector<8x16xf32>
    %190 = vector.extract_strided_slice %6 {offsets = [0, 6, 0], sizes = [8, 1, 64], strides = [1, 1, 1]} : vector<8x8x128xf32> to vector<8x1x64xf32>
    %191 = vector.shape_cast %190 : vector<8x1x64xf32> to vector<8x64xf32>
    %192 = arith.truncf %189 : vector<8x16xf32> to vector<8x16xbf16>
    %cst_33 = arith.constant dense<0.000000e+00> : vector<8x64xf32>
    %193 = tpu.matmul %192, %7, %cst_33 {dimension_numbers = #tpu.dot_dimension_numbers<[1], [0], [0], [1], [0, 0, 1, 1], [], []>} : vector<8x16xbf16>, vector<16x64xbf16>, vector<8x64xf32> -> vector<8x64xf32>
    %194 = arith.addf %191, %193 : vector<8x64xf32>
    %195 = vector.extract_strided_slice %194 {offsets = [0, 0], sizes = [8, 16], strides = [1, 1]} : vector<8x64xf32> to vector<8x16xf32>
    %196 = arith.negf %195 : vector<8x16xf32>
    %197 = math.exp %196 : vector<8x16xf32>
    %cst_34 = arith.constant 1.000000e+00 : f32
    %198 = vector.broadcast %cst_34 : f32 to vector<8x16xf32>
    %199 = arith.addf %198, %197 : vector<8x16xf32>
    %200 = arith.divf %198, %199 : vector<8x16xf32>
    %201 = vector.extract_strided_slice %194 {offsets = [0, 16], sizes = [8, 16], strides = [1, 1]} : vector<8x64xf32> to vector<8x16xf32>
    %202 = arith.negf %201 : vector<8x16xf32>
    %203 = math.exp %202 : vector<8x16xf32>
    %cst_35 = arith.constant 1.000000e+00 : f32
    %204 = vector.broadcast %cst_35 : f32 to vector<8x16xf32>
    %205 = arith.addf %204, %203 : vector<8x16xf32>
    %206 = arith.divf %204, %205 : vector<8x16xf32>
    %207 = vector.extract_strided_slice %194 {offsets = [0, 32], sizes = [8, 16], strides = [1, 1]} : vector<8x64xf32> to vector<8x16xf32>
    %208 = math.tanh %207 : vector<8x16xf32>
    %209 = vector.extract_strided_slice %194 {offsets = [0, 48], sizes = [8, 16], strides = [1, 1]} : vector<8x64xf32> to vector<8x16xf32>
    %210 = arith.negf %209 : vector<8x16xf32>
    %211 = math.exp %210 : vector<8x16xf32>
    %cst_36 = arith.constant 1.000000e+00 : f32
    %212 = vector.broadcast %cst_36 : f32 to vector<8x16xf32>
    %213 = arith.addf %212, %211 : vector<8x16xf32>
    %214 = arith.divf %212, %213 : vector<8x16xf32>
    %215 = arith.mulf %206, %187 : vector<8x16xf32>
    %216 = arith.mulf %200, %208 : vector<8x16xf32>
    %217 = arith.addf %215, %216 : vector<8x16xf32>
    %218 = math.tanh %217 : vector<8x16xf32>
    %219 = arith.mulf %214, %218 : vector<8x16xf32>
    %220 = vector.extract_strided_slice %6 {offsets = [0, 7, 0], sizes = [8, 1, 64], strides = [1, 1, 1]} : vector<8x8x128xf32> to vector<8x1x64xf32>
    %221 = vector.shape_cast %220 : vector<8x1x64xf32> to vector<8x64xf32>
    %222 = arith.truncf %219 : vector<8x16xf32> to vector<8x16xbf16>
    %cst_37 = arith.constant dense<0.000000e+00> : vector<8x64xf32>
    %223 = tpu.matmul %222, %7, %cst_37 {dimension_numbers = #tpu.dot_dimension_numbers<[1], [0], [0], [1], [0, 0, 1, 1], [], []>} : vector<8x16xbf16>, vector<16x64xbf16>, vector<8x64xf32> -> vector<8x64xf32>
    %224 = arith.addf %221, %223 : vector<8x64xf32>
    %225 = vector.extract_strided_slice %224 {offsets = [0, 0], sizes = [8, 16], strides = [1, 1]} : vector<8x64xf32> to vector<8x16xf32>
    %226 = arith.negf %225 : vector<8x16xf32>
    %227 = math.exp %226 : vector<8x16xf32>
    %cst_38 = arith.constant 1.000000e+00 : f32
    %228 = vector.broadcast %cst_38 : f32 to vector<8x16xf32>
    %229 = arith.addf %228, %227 : vector<8x16xf32>
    %230 = arith.divf %228, %229 : vector<8x16xf32>
    %231 = vector.extract_strided_slice %224 {offsets = [0, 16], sizes = [8, 16], strides = [1, 1]} : vector<8x64xf32> to vector<8x16xf32>
    %232 = arith.negf %231 : vector<8x16xf32>
    %233 = math.exp %232 : vector<8x16xf32>
    %cst_39 = arith.constant 1.000000e+00 : f32
    %234 = vector.broadcast %cst_39 : f32 to vector<8x16xf32>
    %235 = arith.addf %234, %233 : vector<8x16xf32>
    %236 = arith.divf %234, %235 : vector<8x16xf32>
    %237 = vector.extract_strided_slice %224 {offsets = [0, 32], sizes = [8, 16], strides = [1, 1]} : vector<8x64xf32> to vector<8x16xf32>
    %238 = math.tanh %237 : vector<8x16xf32>
    %239 = vector.extract_strided_slice %224 {offsets = [0, 48], sizes = [8, 16], strides = [1, 1]} : vector<8x64xf32> to vector<8x16xf32>
    %240 = arith.negf %239 : vector<8x16xf32>
    %241 = math.exp %240 : vector<8x16xf32>
    %cst_40 = arith.constant 1.000000e+00 : f32
    %242 = vector.broadcast %cst_40 : f32 to vector<8x16xf32>
    %243 = arith.addf %242, %241 : vector<8x16xf32>
    %244 = arith.divf %242, %243 : vector<8x16xf32>
    %245 = arith.mulf %236, %217 : vector<8x16xf32>
    %246 = arith.mulf %230, %238 : vector<8x16xf32>
    %247 = arith.addf %245, %246 : vector<8x16xf32>
    %248 = math.tanh %247 : vector<8x16xf32>
    %249 = arith.mulf %244, %248 : vector<8x16xf32>
    %250 = vector.extract_strided_slice %6 {offsets = [0, 7, 64], sizes = [8, 1, 64], strides = [1, 1, 1]} : vector<8x8x128xf32> to vector<8x1x64xf32>
    %251 = vector.shape_cast %250 : vector<8x1x64xf32> to vector<8x64xf32>
    %252 = vector.extract_strided_slice %251 {offsets = [0, 0], sizes = [8, 16], strides = [1, 1]} : vector<8x64xf32> to vector<8x16xf32>
    %253 = arith.negf %252 : vector<8x16xf32>
    %254 = math.exp %253 : vector<8x16xf32>
    %cst_41 = arith.constant 1.000000e+00 : f32
    %255 = vector.broadcast %cst_41 : f32 to vector<8x16xf32>
    %256 = arith.addf %255, %254 : vector<8x16xf32>
    %257 = arith.divf %255, %256 : vector<8x16xf32>
    %258 = vector.extract_strided_slice %251 {offsets = [0, 32], sizes = [8, 16], strides = [1, 1]} : vector<8x64xf32> to vector<8x16xf32>
    %259 = math.tanh %258 : vector<8x16xf32>
    %260 = vector.extract_strided_slice %251 {offsets = [0, 48], sizes = [8, 16], strides = [1, 1]} : vector<8x64xf32> to vector<8x16xf32>
    %261 = arith.negf %260 : vector<8x16xf32>
    %262 = math.exp %261 : vector<8x16xf32>
    %cst_42 = arith.constant 1.000000e+00 : f32
    %263 = vector.broadcast %cst_42 : f32 to vector<8x16xf32>
    %264 = arith.addf %263, %262 : vector<8x16xf32>
    %265 = arith.divf %263, %264 : vector<8x16xf32>
    %266 = arith.mulf %257, %259 : vector<8x16xf32>
    %267 = math.tanh %266 : vector<8x16xf32>
    %268 = arith.mulf %265, %267 : vector<8x16xf32>
    %269 = tpu.concatenate %249, %268 in 1 : vector<8x16xf32>, vector<8x16xf32> -> vector<8x32xf32>
    %c0_43 = arith.constant 0 : index
    %c0_44 = arith.constant 0 : index
    %270 = vector.load %arg5[%c0_43, %c0_44] : memref<8x32xf32, #tpu.memory_space<vmem>>, vector<8x32xf32>
    tpu.vector_store %arg5[%c0_43, %c0_44], %269 {strides = array<i32>} : memref<8x32xf32, #tpu.memory_space<vmem>>, vector<8x32xf32>,
    return
  }
  func.func @transform_0(%arg0: i32) -> (i32, i32) {
    %c0_i32 = arith.constant 0 : i32
    %c0_i32_0 = arith.constant 0 : i32
    return %arg0, %c0_i32 : i32, i32
  }
  func.func @transform_1(%arg0: i32) -> (i32, i32) {
    %c0_i32 = arith.constant 0 : i32
    %c0_i32_0 = arith.constant 0 : i32
    %c0_i32_1 = arith.constant 0 : i32
    return %c0_i32, %c0_i32_0 : i32, i32
  }
  func.func @transform_2(%arg0: i32) -> (i32, i32) {
    %c0_i32 = arith.constant 0 : i32
    %c0_i32_0 = arith.constant 0 : i32
    %c0_i32_1 = arith.constant 0 : i32
    return %c0_i32, %c0_i32_0 : i32, i32
  }
  func.func @transform_3(%arg0: i32) -> (i32, i32) {
    %c0_i32 = arith.constant 0 : i32
    %c0_i32_0 = arith.constant 0 : i32
    %c0_i32_1 = arith.constant 0 : i32
    return %c0_i32, %c0_i32_0 : i32, i32
  }
  func.func @transform_4(%arg0: i32) -> (i32, i32) {
    %c0_i32 = arith.constant 0 : i32
    %c0_i32_0 = arith.constant 0 : i32
    return %arg0, %c0_i32 : i32, i32
  }
}

</mosaic_0001>

<llo_original>
// kernel: tpu_custom_call.1
$region0: #{tpu_custom_call.1}
  #allocation0 [shape = 'u32[]', space=smem, size = 0x4, offset = 0x4, fixed_abs, tag = 'smem constant byte address 0x4 - core index']
  #allocation1 [shape = 'u32[144,128]{1,0:T(1,128)}', space=vmem, size = 0x12000, scoped, tag = 'internal scratch']
  %s0 = inlined_call_operand.vmem [shape: bf16[64,16], index: 0, kind: input, shape index: {}]
  %s1 = inlined_call_operand.vmem [shape: bf16[16,128], index: 1, kind: input, shape index: {}]
  %s2 = inlined_call_operand.vmem [shape: bf16[16,64], index: 2, kind: input, shape index: {}]
  %s3 = inlined_call_operand.vmem [shape: f32[1,128], index: 3, kind: input, shape index: {}]
  %s4 = inlined_call_operand.hbm [shape: f32[8,32], index: 4, kind: output, shape index: {}]
  %s5 = sld [smem:[#allocation0]]
  $region26: #{tpu_custom_call.1} parent=0
    _
  %s7 = ssub.s32 1, %s5
  %s8 = scalar_select 0, %s7, %s5
  $region1: #{tpu_custom_call.1} parent=0
    #allocation2 [shape = 'u8[4096]{0}', space=vmem, size = 0x1000, scoped, tag = 'output window, operand 0, single buffered']
    #allocation3 [shape = 's32[1]{0}', space=sflag, size = 0x4, scoped, tag = 'scoped memory for tpu_custom_call.1']
    %9 = vsyncpa [#allocation3], 0
    // Predicated region
    $region2: #{tpu_custom_call.1} parent=1 // pred_check
      _
    $region3: #{tpu_custom_call.1} parent=1 // pred_check_branch
      %11 = sbr.rel (0) target = $region5
    $region4: #{tpu_custom_call.1} parent=1 // pred_region
      _
    $region5: #{tpu_custom_call.1} parent=1 // pred_fallthru
      _
    // Predicated region
    $region6: #{tpu_custom_call.1} parent=1 // pred_check
      _
    $region7: #{tpu_custom_call.1} parent=1 // pred_check_branch
      %13 = sbr.rel (0) target = $region9
    $region8: #{tpu_custom_call.1} parent=1 // pred_region
      _
    $region9: #{tpu_custom_call.1} parent=1 // pred_fallthru
      _
    // Predicated region
    $region10: #{tpu_custom_call.1} parent=1 // pred_check
      _
    $region11: #{tpu_custom_call.1} parent=1 // pred_check_branch
      %15 = sbr.rel (0) target = $region13
    $region12: #{tpu_custom_call.1} parent=1 // pred_region
      _
    $region13: #{tpu_custom_call.1} parent=1 // pred_fallthru
      _
    // Predicated region
    $region14: #{tpu_custom_call.1} parent=1 // pred_check
      _
    $region15: #{tpu_custom_call.1} parent=1 // pred_check_branch
      %17 = sbr.rel (0) target = $region17
    $region16: #{tpu_custom_call.1} parent=1 // pred_region
      _
    $region17: #{tpu_custom_call.1} parent=1 // pred_fallthru
      _
    %v19 = vld [vmem:[%s0] sm:$0xf]
    %v20 = vld [vmem:[%s0 + $0x4] sm:$0xf]
    %v21 = vld [vmem:[%s0 + $0x8] sm:$0xf]
    %v22 = vld [vmem:[%s0 + $0xc] sm:$0xf]
    %v23 = vld [vmem:[%s0 + $0x10] sm:$0xf]
    %v24 = vld [vmem:[%s0 + $0x14] sm:$0xf]
    %v25 = vld [vmem:[%s0 + $0x18] sm:$0xf]
    %v26 = vld [vmem:[%s0 + $0x1c] sm:$0xf]
    %v27 = vld [vmem:[%s1] sm:$0xf]
    %v28 = vld [vmem:[%s1 + $0x4] sm:$0xf]
    %v29 = vld [vmem:[%s3] sm:$0x1]
    %v31 = vlaneseq
    %v32 = vshrl.u32 %v31, 7
    %v33 = vsub.s32 0, %v32
    %v34 = vrot.slane %v29, %v33
    %v44 = vunpack.c.l.b16 %v19
    %v45 = vunpack.c.l.b16 %v20
    %v46 = vunpack.c.l.b16 %v21
    %v47 = vunpack.c.l.b16 %v22
    %v48 = vunpack.c.l.b16 %v23
    %v49 = vunpack.c.l.b16 %v24
    %v50 = vunpack.c.l.b16 %v25
    %v51 = vunpack.c.l.b16 %v26
    %v52 = vpack.c.b16 %v45, %v44
    %v53 = vpack.c.b16 %v47, %v46
    %v54 = vpack.c.b16 %v49, %v48
    %v55 = vpack.c.b16 %v51, %v50
    %v58 = vunpack.c.l.b16 %v27
    %v59 = vunpack.c.l.b16 %v28
    %v60 = vpack.c.b16 %v59, %v58
    %vm62 = vcmask 130048
    %v64 = vsel %vm62, %v52, 0
    %v67 = vsel %vm62, %v53, 0
    %v70 = vsel %vm62, %v54, 0
    %v73 = vsel %vm62, %v55, 0
    %75 = vmatprep.subr.bf16.mxu0 0
    %76 = vmatpush1.bf16.msra.mxu0 %v60
    %77 = vmatprep.subr.bf16.mxu0 0
    %78 = vmatpush1.bf16.msra.mxu0 0
    %79 = vmatprep.subr.bf16.mxu0 0
    %80 = vmatpush1.bf16.msra.mxu0 0
    %81 = vmatprep.subr.bf16.mxu0 0
    %82 = vmatpush1.bf16.msra.mxu0 0
    %83 = vmatprep.subr.bf16.mxu0 0
    %84 = vmatpush1.bf16.msra.mxu0 0
    %85 = vmatprep.subr.bf16.mxu0 0
    %86 = vmatpush1.bf16.msra.mxu0 0
    %87 = vmatprep.subr.bf16.mxu0 0
    %88 = vmatpush1.bf16.msra.mxu0 0
    %89 = vmatprep.subr.bf16.mxu0 0
    %90 = vmatpush1.bf16.msra.mxu0 0
    %91 = vmatprep.subr.bf16.mxu0 0
    %92 = vmatpush1.bf16.msra.mxu0 0
    %93 = vmatprep.subr.bf16.mxu0 0
    %94 = vmatpush1.bf16.msra.mxu0 0
    %95 = vmatprep.subr.bf16.mxu0 0
    %96 = vmatpush1.bf16.msra.mxu0 0
    %97 = vmatprep.subr.bf16.mxu0 0
    %98 = vmatpush1.bf16.msra.mxu0 0
    %99 = vmatprep.subr.bf16.mxu0 0
    %100 = vmatpush1.bf16.msra.mxu0 0
    %101 = vmatprep.subr.bf16.mxu0 0
    %102 = vmatpush1.bf16.msra.mxu0 0
    %103 = vmatprep.subr.bf16.mxu0 0
    %104 = vmatpush1.bf16.msra.mxu0 0
    %105 = vmatprep.subr.bf16.mxu0 0
    %106 = vmatpush1.bf16.msra.mxu0 0
    %107 = vmatprep.mubr.bf16.mxu0 0
    %108 = vmatmul.mubr.bf16.gmra.mrb[0].mxu0 %v64
    %v109 = vpop.f32.mrb[0].mxu0
    %v110 = vadd.f32 %v34, %v109
    %v111 = vpop.f32.mrb[0].mxu0
    %v112 = vpop.f32.mrb[0].mxu0
    %v113 = vadd.f32 %v34, %v112
    %v114 = vpop.f32.mrb[0].mxu0
    %115 = vmatprep.mubr.bf16.mxu0 0
    %116 = vmatmul.mubr.bf16.gmra.mrb[0].mxu0 %v67
    %v117 = vpop.f32.mrb[0].mxu0
    %v118 = vadd.f32 %v34, %v117
    %v119 = vpop.f32.mrb[0].mxu0
    %v120 = vpop.f32.mrb[0].mxu0
    %v121 = vadd.f32 %v34, %v120
    %v122 = vpop.f32.mrb[0].mxu0
    %123 = vmatprep.mubr.bf16.mxu0 0
    %124 = vmatmul.mubr.bf16.gmra.mrb[0].mxu0 %v70
    %v125 = vpop.f32.mrb[0].mxu0
    %v126 = vadd.f32 %v34, %v125
    %v127 = vpop.f32.mrb[0].mxu0
    %v128 = vpop.f32.mrb[0].mxu0
    %v129 = vadd.f32 %v34, %v128
    %v130 = vpop.f32.mrb[0].mxu0
    %131 = vmatprep.mubr.bf16.mxu0 0
    %132 = vmatmul.mubr.bf16.gmra.mrb[0].mxu0 %v73
    %v133 = vpop.f32.mrb[0].mxu0
    %v134 = vadd.f32 %v34, %v133
    %v135 = vpop.f32.mrb[0].mxu0
    %v136 = vpop.f32.mrb[0].mxu0
    %v137 = vadd.f32 %v34, %v136
    %v138 = vpop.f32.mrb[0].mxu0
    %139 = vdwg.mxu0
    %v140 = vld [vmem:[%s2] sm:$0xf]
    %v141 = vld [vmem:[%s2 + $0x4] sm:$0xf]
    %v144 = vunpack.c.l.b16 %v140
    %v145 = vunpack.c.l.b16 %v141
    %v146 = vpack.c.b16 %v145, %v144
    %v149 = vsel %vm62, 0, 0
    %151 = vmatprep.subr.bf16.mxu0 0
    %152 = vmatpush1.bf16.msra.mxu0 %v146
    %153 = vmatprep.subr.bf16.mxu0 0
    %154 = vmatpush1.bf16.msra.mxu0 0
    %155 = vmatprep.subr.bf16.mxu0 0
    %156 = vmatpush1.bf16.msra.mxu0 0
    %157 = vmatprep.subr.bf16.mxu0 0
    %158 = vmatpush1.bf16.msra.mxu0 0
    %159 = vmatprep.subr.bf16.mxu0 0
    %160 = vmatpush1.bf16.msra.mxu0 0
    %161 = vmatprep.subr.bf16.mxu0 0
    %162 = vmatpush1.bf16.msra.mxu0 0
    %163 = vmatprep.subr.bf16.mxu0 0
    %164 = vmatpush1.bf16.msra.mxu0 0
    %165 = vmatprep.subr.bf16.mxu0 0
    %166 = vmatpush1.bf16.msra.mxu0 0
    %167 = vmatprep.subr.bf16.mxu0 0
    %168 = vmatpush1.bf16.msra.mxu0 0
    %169 = vmatprep.subr.bf16.mxu0 0
    %170 = vmatpush1.bf16.msra.mxu0 0
    %171 = vmatprep.subr.bf16.mxu0 0
    %172 = vmatpush1.bf16.msra.mxu0 0
    %173 = vmatprep.subr.bf16.mxu0 0
    %174 = vmatpush1.bf16.msra.mxu0 0
    %175 = vmatprep.subr.bf16.mxu0 0
    %176 = vmatpush1.bf16.msra.mxu0 0
    %177 = vmatprep.subr.bf16.mxu0 0
    %178 = vmatpush1.bf16.msra.mxu0 0
    %179 = vmatprep.subr.bf16.mxu0 0
    %180 = vmatpush1.bf16.msra.mxu0 0
    %181 = vmatprep.subr.bf16.mxu0 0
    %182 = vmatpush1.bf16.msra.mxu0 0
    %183 = vmatprep.mubr.bf16.mxu0 0
    %184 = vmatmul.mubr.bf16.gmra.mrb[0].mxu0 %v149
    %v185 = vpop.f32.mrb[0].mxu0
    %v186 = vadd.f32 0.0, %v185
    %v187 = vpop.f32.mrb[0].mxu0
    %v188 = vpop.f32.mrb[0].mxu0
    %v189 = vpop.f32.mrb[0].mxu0
    %190 = vdwg.mxu0
    %v192 = vrot.slane %v186, 1
    %v193 = vrot.slane %v186, 2
    %v194 = vrot.slane %v186, 3
    %v195 = vrot.slane %v186, 4
    %v196 = vrot.slane %v186, 5
    %v197 = vrot.slane %v186, 6
    %v198 = vrot.slane %v186, 7
    %v207 = vadd.f32 %v110, %v186
    %v208 = vadd.f32 %v113, %v192
    %v209 = vadd.f32 %v118, %v193
    %v210 = vadd.f32 %v121, %v194
    %v211 = vadd.f32 %v126, %v195
    %v212 = vadd.f32 %v129, %v196
    %v213 = vadd.f32 %v134, %v197
    %v214 = vadd.f32 %v137, %v198
    %v215 = vxor.u32 %v207, 2147483648
    %v216 = vxor.u32 %v208, 2147483648
    %v217 = vxor.u32 %v209, 2147483648
    %v218 = vxor.u32 %v210, 2147483648
    %v219 = vxor.u32 %v211, 2147483648
    %v220 = vxor.u32 %v212, 2147483648
    %v221 = vxor.u32 %v213, 2147483648
    %v222 = vxor.u32 %v214, 2147483648
    %v223 = vmul.f32 %v215, 1.442695
    %v224 = vpow.pop %v223
    %v225 = vmul.f32 %v216, 1.442695
    %v226 = vpow.pop %v225
    %v227 = vmul.f32 %v217, 1.442695
    %v228 = vpow.pop %v227
    %v229 = vmul.f32 %v218, 1.442695
    %v230 = vpow.pop %v229
    %v231 = vmul.f32 %v219, 1.442695
    %v232 = vpow.pop %v231
    %v233 = vmul.f32 %v220, 1.442695
    %v234 = vpow.pop %v233
    %v235 = vmul.f32 %v221, 1.442695
    %v236 = vpow.pop %v235
    %v237 = vmul.f32 %v222, 1.442695
    %v238 = vpow.pop %v237
    %v239 = vadd.f32 %v224, 1.0
    %v240 = vadd.f32 %v226, 1.0
    %v241 = vadd.f32 %v228, 1.0
    %v242 = vadd.f32 %v230, 1.0
    %v243 = vadd.f32 %v232, 1.0
    %v244 = vadd.f32 %v234, 1.0
    %v245 = vadd.f32 %v236, 1.0
    %v246 = vadd.f32 %v238, 1.0
    %v247 = vrcp.pop %v239
    %v248 = vmul.f32 1.0, %v247
    %v249 = vrcp.pop %v240
    %v250 = vmul.f32 1.0, %v249
    %v251 = vrcp.pop %v241
    %v252 = vmul.f32 1.0, %v251
    %v253 = vrcp.pop %v242
    %v254 = vmul.f32 1.0, %v253
    %v255 = vrcp.pop %v243
    %v256 = vmul.f32 1.0, %v255
    %v257 = vrcp.pop %v244
    %v258 = vmul.f32 1.0, %v257
    %v259 = vrcp.pop %v245
    %v260 = vmul.f32 1.0, %v259
    %v261 = vrcp.pop %v246
    %v262 = vmul.f32 1.0, %v261
    %v263 = vtanh.pop %v207
    %v264 = vtanh.pop %v208
    %v265 = vtanh.pop %v209
    %v266 = vtanh.pop %v210
    %v267 = vtanh.pop %v211
    %v268 = vtanh.pop %v212
    %v269 = vtanh.pop %v213
    %v270 = vtanh.pop %v214
    %v271 = vmul.f32 %v248, 0.0
    %v272 = vmul.f32 %v250, 0.0
    %v273 = vmul.f32 %v252, 0.0
    %v274 = vmul.f32 %v254, 0.0
    %v275 = vmul.f32 %v256, 0.0
    %v276 = vmul.f32 %v258, 0.0
    %v277 = vmul.f32 %v260, 0.0
    %v278 = vmul.f32 %v262, 0.0
    %287 = vrot.lane.b32.xlu0 %v263, 96
    %v288 = vpop.permute.xlu0 %287
    %289 = vrot.lane.b32.xlu0 %v264, 96
    %v290 = vpop.permute.xlu0 %289
    %291 = vrot.lane.b32.xlu0 %v265, 96
    %v292 = vpop.permute.xlu0 %291
    %293 = vrot.lane.b32.xlu0 %v266, 96
    %v294 = vpop.permute.xlu0 %293
    %295 = vrot.lane.b32.xlu0 %v267, 96
    %v296 = vpop.permute.xlu0 %295
    %297 = vrot.lane.b32.xlu0 %v268, 96
    %v298 = vpop.permute.xlu0 %297
    %299 = vrot.lane.b32.xlu0 %v269, 96
    %v300 = vpop.permute.xlu0 %299
    %301 = vrot.lane.b32.xlu0 %v270, 96
    %v302 = vpop.permute.xlu0 %301
    %v311 = vmul.f32 %v248, %v288
    %v312 = vmul.f32 %v250, %v290
    %v313 = vmul.f32 %v252, %v292
    %v314 = vmul.f32 %v254, %v294
    %v315 = vmul.f32 %v256, %v296
    %v316 = vmul.f32 %v258, %v298
    %v317 = vmul.f32 %v260, %v300
    %v318 = vmul.f32 %v262, %v302
    %327 = vrot.lane.b32.xlu0 %v311, 16
    %v328 = vpop.permute.xlu0 %327
    %329 = vrot.lane.b32.xlu0 %v312, 16
    %v330 = vpop.permute.xlu0 %329
    %331 = vrot.lane.b32.xlu0 %v313, 16
    %v332 = vpop.permute.xlu0 %331
    %333 = vrot.lane.b32.xlu0 %v314, 16
    %v334 = vpop.permute.xlu0 %333
    %335 = vrot.lane.b32.xlu0 %v315, 16
    %v336 = vpop.permute.xlu0 %335
    %337 = vrot.lane.b32.xlu0 %v316, 16
    %v338 = vpop.permute.xlu0 %337
    %339 = vrot.lane.b32.xlu0 %v317, 16
    %v340 = vpop.permute.xlu0 %339
    %341 = vrot.lane.b32.xlu0 %v318, 16
    %v342 = vpop.permute.xlu0 %341
    %v351 = vadd.f32 %v271, %v328
    %v352 = vadd.f32 %v272, %v330
    %v353 = vadd.f32 %v273, %v332
    %v354 = vadd.f32 %v274, %v334
    %v355 = vadd.f32 %v275, %v336
    %v356 = vadd.f32 %v276, %v338
    %v357 = vadd.f32 %v277, %v340
    %v358 = vadd.f32 %v278, %v342
    %v359 = vtanh.pop %v351
    %v360 = vtanh.pop %v352
    %v361 = vtanh.pop %v353
    %v362 = vtanh.pop %v354
    %v363 = vtanh.pop %v355
    %v364 = vtanh.pop %v356
    %v365 = vtanh.pop %v357
    %v366 = vtanh.pop %v358
    %375 = vrot.lane.b32.xlu0 %v359, 32
    %v376 = vpop.permute.xlu0 %375
    %377 = vrot.lane.b32.xlu0 %v360, 32
    %v378 = vpop.permute.xlu0 %377
    %379 = vrot.lane.b32.xlu0 %v361, 32
    %v380 = vpop.permute.xlu0 %379
    %381 = vrot.lane.b32.xlu0 %v362, 32
    %v382 = vpop.permute.xlu0 %381
    %383 = vrot.lane.b32.xlu0 %v363, 32
    %v384 = vpop.permute.xlu0 %383
    %385 = vrot.lane.b32.xlu0 %v364, 32
    %v386 = vpop.permute.xlu0 %385
    %387 = vrot.lane.b32.xlu0 %v365, 32
    %v388 = vpop.permute.xlu0 %387
    %389 = vrot.lane.b32.xlu0 %v366, 32
    %v390 = vpop.permute.xlu0 %389
    %v399 = vmul.f32 %v248, %v376
    %v400 = vmul.f32 %v250, %v378
    %v401 = vmul.f32 %v252, %v380
    %v402 = vmul.f32 %v254, %v382
    %v403 = vmul.f32 %v256, %v384
    %v404 = vmul.f32 %v258, %v386
    %v405 = vmul.f32 %v260, %v388
    %v406 = vmul.f32 %v262, %v390
    %v407 = vpack.c.bf16 %v399, %v399
    %v408 = vpack.c.bf16 %v400, %v400
    %v409 = vpack.c.bf16 %v401, %v401
    %v410 = vpack.c.bf16 %v402, %v402
    %v411 = vpack.c.bf16 %v403, %v403
    %v412 = vpack.c.bf16 %v404, %v404
    %v413 = vpack.c.bf16 %v405, %v405
    %v414 = vpack.c.bf16 %v406, %v406
    %v423 = vunpack.c.l.b16 %v407
    %v424 = vunpack.c.l.b16 %v408
    %v425 = vunpack.c.l.b16 %v409
    %v426 = vunpack.c.l.b16 %v410
    %v427 = vunpack.c.l.b16 %v411
    %v428 = vunpack.c.l.b16 %v412
    %v429 = vunpack.c.l.b16 %v413
    %v430 = vunpack.c.l.b16 %v414
    %v431 = vrot.slane %v424, 7
    %vm432 = vcmask 1041409
    %v433 = vsel %vm432, %v431, %v423
    %v434 = vrot.slane %v425, 6
    %vm435 = vcmask 1042434
    %v436 = vsel %vm435, %v434, %v433
    %v437 = vrot.slane %v426, 5
    %vm438 = vcmask 1043459
    %v439 = vsel %vm438, %v437, %v436
    %v440 = vrot.slane %v427, 4
    %vm441 = vcmask 1044484
    %v442 = vsel %vm441, %v440, %v439
    %v443 = vrot.slane %v428, 3
    %vm444 = vcmask 1045509
    %v445 = vsel %vm444, %v443, %v442
    %v446 = vrot.slane %v429, 2
    %vm447 = vcmask 1046534
    %v448 = vsel %vm447, %v446, %v445
    %v449 = vrot.slane %v430, 1
    %vm450 = vcmask 1047559
    %v451 = vsel %vm450, %v449, %v448
    %v452 = vpack.c.b16 %v451, %v451
    %453 = vrot.lane.b32.xlu0 %v452, 80
    %v454 = vpop.permute.xlu0 %453
    %v456 = vsel %vm62, %v454, 0
    %458 = vmatprep.subr.bf16.mxu0 0
    %459 = vmatpush1.bf16.msra.mxu0 %v146
    %460 = vmatprep.subr.bf16.mxu0 0
    %461 = vmatpush1.bf16.msra.mxu0 0
    %462 = vmatprep.subr.bf16.mxu0 0
    %463 = vmatpush1.bf16.msra.mxu0 0
    %464 = vmatprep.subr.bf16.mxu0 0
    %465 = vmatpush1.bf16.msra.mxu0 0
    %466 = vmatprep.subr.bf16.mxu0 0
    %467 = vmatpush1.bf16.msra.mxu0 0
    %468 = vmatprep.subr.bf16.mxu0 0
    %469 = vmatpush1.bf16.msra.mxu0 0
    %470 = vmatprep.subr.bf16.mxu0 0
    %471 = vmatpush1.bf16.msra.mxu0 0
    %472 = vmatprep.subr.bf16.mxu0 0
    %473 = vmatpush1.bf16.msra.mxu0 0
    %474 = vmatprep.subr.bf16.mxu0 0
    %475 = vmatpush1.bf16.msra.mxu0 0
    %476 = vmatprep.subr.bf16.mxu0 0
    %477 = vmatpush1.bf16.msra.mxu0 0
    %478 = vmatprep.subr.bf16.mxu0 0
    %479 = vmatpush1.bf16.msra.mxu0 0
    %480 = vmatprep.subr.bf16.mxu0 0
    %481 = vmatpush1.bf16.msra.mxu0 0
    %482 = vmatprep.subr.bf16.mxu0 0
    %483 = vmatpush1.bf16.msra.mxu0 0
    %484 = vmatprep.subr.bf16.mxu0 0
    %485 = vmatpush1.bf16.msra.mxu0 0
    %486 = vmatprep.subr.bf16.mxu0 0
    %487 = vmatpush1.bf16.msra.mxu0 0
    %488 = vmatprep.subr.bf16.mxu0 0
    %489 = vmatpush1.bf16.msra.mxu0 0
    %490 = vmatprep.mubr.bf16.mxu0 0
    %491 = vmatmul.mubr.bf16.gmra.mrb[0].mxu0 %v456
    %v492 = vpop.f32.mrb[0].mxu0
    %v493 = vadd.f32 0.0, %v492
    %v494 = vpop.f32.mrb[0].mxu0
    %v495 = vpop.f32.mrb[0].mxu0
    %v496 = vpop.f32.mrb[0].mxu0
    %497 = vdwg.mxu0
    %v499 = vrot.slane %v493, 7
    %v500 = vrot.slane %v493, 1
    %v501 = vrot.slane %v493, 2
    %v502 = vrot.slane %v493, 3
    %v503 = vrot.slane %v493, 4
    %v504 = vrot.slane %v493, 5
    %v505 = vrot.slane %v493, 6
    %v514 = vadd.f32 %v110, %v499
    %v515 = vadd.f32 %v113, %v493
    %v516 = vadd.f32 %v118, %v500
    %v517 = vadd.f32 %v121, %v501
    %v518 = vadd.f32 %v126, %v502
    %v519 = vadd.f32 %v129, %v503
    %v520 = vadd.f32 %v134, %v504
    %v521 = vadd.f32 %v137, %v505
    %v522 = vxor.u32 %v514, 2147483648
    %v523 = vxor.u32 %v515, 2147483648
    %v524 = vxor.u32 %v516, 2147483648
    %v525 = vxor.u32 %v517, 2147483648
    %v526 = vxor.u32 %v518, 2147483648
    %v527 = vxor.u32 %v519, 2147483648
    %v528 = vxor.u32 %v520, 2147483648
    %v529 = vxor.u32 %v521, 2147483648
    %v530 = vmul.f32 %v522, 1.442695
    %v531 = vpow.pop %v530
    %v532 = vmul.f32 %v523, 1.442695
    %v533 = vpow.pop %v532
    %v534 = vmul.f32 %v524, 1.442695
    %v535 = vpow.pop %v534
    %v536 = vmul.f32 %v525, 1.442695
    %v537 = vpow.pop %v536
    %v538 = vmul.f32 %v526, 1.442695
    %v539 = vpow.pop %v538
    %v540 = vmul.f32 %v527, 1.442695
    %v541 = vpow.pop %v540
    %v542 = vmul.f32 %v528, 1.442695
    %v543 = vpow.pop %v542
    %v544 = vmul.f32 %v529, 1.442695
    %v545 = vpow.pop %v544
    %v546 = vadd.f32 %v531, 1.0
    %v547 = vadd.f32 %v533, 1.0
    %v548 = vadd.f32 %v535, 1.0
    %v549 = vadd.f32 %v537, 1.0
    %v550 = vadd.f32 %v539, 1.0
    %v551 = vadd.f32 %v541, 1.0
    %v552 = vadd.f32 %v543, 1.0
    %v553 = vadd.f32 %v545, 1.0
    %v554 = vrcp.pop %v546
    %v555 = vmul.f32 1.0, %v554
    %v556 = vrcp.pop %v547
    %v557 = vmul.f32 1.0, %v556
    %v558 = vrcp.pop %v548
    %v559 = vmul.f32 1.0, %v558
    %v560 = vrcp.pop %v549
    %v561 = vmul.f32 1.0, %v560
    %v562 = vrcp.pop %v550
    %v563 = vmul.f32 1.0, %v562
    %v564 = vrcp.pop %v551
    %v565 = vmul.f32 1.0, %v564
    %v566 = vrcp.pop %v552
    %v567 = vmul.f32 1.0, %v566
    %v568 = vrcp.pop %v553
    %v569 = vmul.f32 1.0, %v568
    %v570 = vtanh.pop %v514
    %v571 = vtanh.pop %v515
    %v572 = vtanh.pop %v516
    %v573 = vtanh.pop %v517
    %v574 = vtanh.pop %v518
    %v575 = vtanh.pop %v519
    %v576 = vtanh.pop %v520
    %v577 = vtanh.pop %v521
    %v586 = vrot.slane %v351, 7
    %v587 = vrot.slane %v352, 7
    %v588 = vrot.slane %v353, 7
    %v589 = vrot.slane %v354, 7
    %v590 = vrot.slane %v355, 7
    %v591 = vrot.slane %v356, 7
    %v592 = vrot.slane %v357, 7
    %v593 = vrot.slane %v358, 7
    %v602 = vmul.f32 %v555, %v586
    %v603 = vmul.f32 %v557, %v587
    %v604 = vmul.f32 %v559, %v588
    %v605 = vmul.f32 %v561, %v589
    %v606 = vmul.f32 %v563, %v590
    %v607 = vmul.f32 %v565, %v591
    %v608 = vmul.f32 %v567, %v592
    %v609 = vmul.f32 %v569, %v593
    %618 = vrot.lane.b32.xlu0 %v570, 96
    %v619 = vpop.permute.xlu0 %618
    %620 = vrot.lane.b32.xlu0 %v571, 96
    %v621 = vpop.permute.xlu0 %620
    %622 = vrot.lane.b32.xlu0 %v572, 96
    %v623 = vpop.permute.xlu0 %622
    %624 = vrot.lane.b32.xlu0 %v573, 96
    %v625 = vpop.permute.xlu0 %624
    %626 = vrot.lane.b32.xlu0 %v574, 96
    %v627 = vpop.permute.xlu0 %626
    %628 = vrot.lane.b32.xlu0 %v575, 96
    %v629 = vpop.permute.xlu0 %628
    %630 = vrot.lane.b32.xlu0 %v576, 96
    %v631 = vpop.permute.xlu0 %630
    %632 = vrot.lane.b32.xlu0 %v577, 96
    %v633 = vpop.permute.xlu0 %632
    %v642 = vmul.f32 %v555, %v619
    %v643 = vmul.f32 %v557, %v621
    %v644 = vmul.f32 %v559, %v623
    %v645 = vmul.f32 %v561, %v625
    %v646 = vmul.f32 %v563, %v627
    %v647 = vmul.f32 %v565, %v629
    %v648 = vmul.f32 %v567, %v631
    %v649 = vmul.f32 %v569, %v633
    %658 = vrot.lane.b32.xlu0 %v642, 16
    %v659 = vpop.permute.xlu0 %658
    %660 = vrot.lane.b32.xlu0 %v643, 16
    %v661 = vpop.permute.xlu0 %660
    %662 = vrot.lane.b32.xlu0 %v644, 16
    %v663 = vpop.permute.xlu0 %662
    %664 = vrot.lane.b32.xlu0 %v645, 16
    %v665 = vpop.permute.xlu0 %664
    %666 = vrot.lane.b32.xlu0 %v646, 16
    %v667 = vpop.permute.xlu0 %666
    %668 = vrot.lane.b32.xlu0 %v647, 16
    %v669 = vpop.permute.xlu0 %668
    %670 = vrot.lane.b32.xlu0 %v648, 16
    %v671 = vpop.permute.xlu0 %670
    %672 = vrot.lane.b32.xlu0 %v649, 16
    %v673 = vpop.permute.xlu0 %672
    %v682 = vadd.f32 %v602, %v659
    %v683 = vadd.f32 %v603, %v661
    %v684 = vadd.f32 %v604, %v663
    %v685 = vadd.f32 %v605, %v665
    %v686 = vadd.f32 %v606, %v667
    %v687 = vadd.f32 %v607, %v669
    %v688 = vadd.f32 %v608, %v671
    %v689 = vadd.f32 %v609, %v673
    %v690 = vtanh.pop %v682
    %v691 = vtanh.pop %v683
    %v692 = vtanh.pop %v684
    %v693 = vtanh.pop %v685
    %v694 = vtanh.pop %v686
    %v695 = vtanh.pop %v687
    %v696 = vtanh.pop %v688
    %v697 = vtanh.pop %v689
    %706 = vrot.lane.b32.xlu0 %v690, 32
    %v707 = vpop.permute.xlu0 %706
    %708 = vrot.lane.b32.xlu0 %v691, 32
    %v709 = vpop.permute.xlu0 %708
    %710 = vrot.lane.b32.xlu0 %v692, 32
    %v711 = vpop.permute.xlu0 %710
    %712 = vrot.lane.b32.xlu0 %v693, 32
    %v713 = vpop.permute.xlu0 %712
    %714 = vrot.lane.b32.xlu0 %v694, 32
    %v715 = vpop.permute.xlu0 %714
    %716 = vrot.lane.b32.xlu0 %v695, 32
    %v717 = vpop.permute.xlu0 %716
    %718 = vrot.lane.b32.xlu0 %v696, 32
    %v719 = vpop.permute.xlu0 %718
    %720 = vrot.lane.b32.xlu0 %v697, 32
    %v721 = vpop.permute.xlu0 %720
    %v730 = vmul.f32 %v555, %v707
    %v731 = vmul.f32 %v557, %v709
    %v732 = vmul.f32 %v559, %v711
    %v733 = vmul.f32 %v561, %v713
    %v734 = vmul.f32 %v563, %v715
    %v735 = vmul.f32 %v565, %v717
    %v736 = vmul.f32 %v567, %v719
    %v737 = vmul.f32 %v569, %v721
    %v738 = vpack.c.bf16 %v730, %v730
    %v739 = vpack.c.bf16 %v731, %v731
    %v740 = vpack.c.bf16 %v732, %v732
    %v741 = vpack.c.bf16 %v733, %v733
    %v742 = vpack.c.bf16 %v734, %v734
    %v743 = vpack.c.bf16 %v735, %v735
    %v744 = vpack.c.bf16 %v736, %v736
    %v745 = vpack.c.bf16 %v737, %v737
    %v754 = vunpack.c.l.b16 %v738
    %v755 = vunpack.c.l.b16 %v739
    %v756 = vunpack.c.l.b16 %v740
    %v757 = vunpack.c.l.b16 %v741
    %v758 = vunpack.c.l.b16 %v742
    %v759 = vunpack.c.l.b16 %v743
    %v760 = vunpack.c.l.b16 %v744
    %v761 = vunpack.c.l.b16 %v745
    %v762 = vrot.slane %v754, 1
    %v763 = vsel %vm432, %v755, %v762
    %v764 = vrot.slane %v756, 7
    %v765 = vsel %vm435, %v764, %v763
    %v766 = vrot.slane %v757, 6
    %v767 = vsel %vm438, %v766, %v765
    %v768 = vrot.slane %v758, 5
    %v769 = vsel %vm441, %v768, %v767
    %v770 = vrot.slane %v759, 4
    %v771 = vsel %vm444, %v770, %v769
    %v772 = vrot.slane %v760, 3
    %v773 = vsel %vm447, %v772, %v771
    %v774 = vrot.slane %v761, 2
    %v775 = vsel %vm450, %v774, %v773
    %v776 = vpack.c.b16 %v775, %v775
    %777 = vrot.lane.b32.xlu0 %v776, 80
    %v778 = vpop.permute.xlu0 %777
    %v780 = vsel %vm62, %v778, 0
    %782 = vmatprep.subr.bf16.mxu0 0
    %783 = vmatpush1.bf16.msra.mxu0 %v146
    %784 = vmatprep.subr.bf16.mxu0 0
    %785 = vmatpush1.bf16.msra.mxu0 0
    %786 = vmatprep.subr.bf16.mxu0 0
    %787 = vmatpush1.bf16.msra.mxu0 0
    %788 = vmatprep.subr.bf16.mxu0 0
    %789 = vmatpush1.bf16.msra.mxu0 0
    %790 = vmatprep.subr.bf16.mxu0 0
    %791 = vmatpush1.bf16.msra.mxu0 0
    %792 = vmatprep.subr.bf16.mxu0 0
    %793 = vmatpush1.bf16.msra.mxu0 0
    %794 = vmatprep.subr.bf16.mxu0 0
    %795 = vmatpush1.bf16.msra.mxu0 0
    %796 = vmatprep.subr.bf16.mxu0 0
    %797 = vmatpush1.bf16.msra.mxu0 0
    %798 = vmatprep.subr.bf16.mxu0 0
    %799 = vmatpush1.bf16.msra.mxu0 0
    %800 = vmatprep.subr.bf16.mxu0 0
    %801 = vmatpush1.bf16.msra.mxu0 0
    %802 = vmatprep.subr.bf16.mxu0 0
    %803 = vmatpush1.bf16.msra.mxu0 0
    %804 = vmatprep.subr.bf16.mxu0 0
    %805 = vmatpush1.bf16.msra.mxu0 0
    %806 = vmatprep.subr.bf16.mxu0 0
    %807 = vmatpush1.bf16.msra.mxu0 0
    %808 = vmatprep.subr.bf16.mxu0 0
    %809 = vmatpush1.bf16.msra.mxu0 0
    %810 = vmatprep.subr.bf16.mxu0 0
    %811 = vmatpush1.bf16.msra.mxu0 0
    %812 = vmatprep.subr.bf16.mxu0 0
    %813 = vmatpush1.bf16.msra.mxu0 0
    %814 = vmatprep.mubr.bf16.mxu0 0
    %815 = vmatmul.mubr.bf16.gmra.mrb[0].mxu0 %v780
    %v816 = vpop.f32.mrb[0].mxu0
    %v817 = vadd.f32 0.0, %v816
    %v818 = vpop.f32.mrb[0].mxu0
    %v819 = vpop.f32.mrb[0].mxu0
    %v820 = vpop.f32.mrb[0].mxu0
    %821 = vdwg.mxu0
    %v823 = vrot.slane %v817, 6
    %v824 = vrot.slane %v817, 7
    %v825 = vrot.slane %v817, 1
    %v826 = vrot.slane %v817, 2
    %v827 = vrot.slane %v817, 3
    %v828 = vrot.slane %v817, 4
    %v829 = vrot.slane %v817, 5
    %v838 = vadd.f32 %v110, %v823
    %v839 = vadd.f32 %v113, %v824
    %v840 = vadd.f32 %v118, %v817
    %v841 = vadd.f32 %v121, %v825
    %v842 = vadd.f32 %v126, %v826
    %v843 = vadd.f32 %v129, %v827
    %v844 = vadd.f32 %v134, %v828
    %v845 = vadd.f32 %v137, %v829
    %v846 = vxor.u32 %v838, 2147483648
    %v847 = vxor.u32 %v839, 2147483648
    %v848 = vxor.u32 %v840, 2147483648
    %v849 = vxor.u32 %v841, 2147483648
    %v850 = vxor.u32 %v842, 2147483648
    %v851 = vxor.u32 %v843, 2147483648
    %v852 = vxor.u32 %v844, 2147483648
    %v853 = vxor.u32 %v845, 2147483648
    %v854 = vmul.f32 %v846, 1.442695
    %v855 = vpow.pop %v854
    %v856 = vmul.f32 %v847, 1.442695
    %v857 = vpow.pop %v856
    %v858 = vmul.f32 %v848, 1.442695
    %v859 = vpow.pop %v858
    %v860 = vmul.f32 %v849, 1.442695
    %v861 = vpow.pop %v860
    %v862 = vmul.f32 %v850, 1.442695
    %v863 = vpow.pop %v862
    %v864 = vmul.f32 %v851, 1.442695
    %v865 = vpow.pop %v864
    %v866 = vmul.f32 %v852, 1.442695
    %v867 = vpow.pop %v866
    %v868 = vmul.f32 %v853, 1.442695
    %v869 = vpow.pop %v868
    %v870 = vadd.f32 %v855, 1.0
    %v871 = vadd.f32 %v857, 1.0
    %v872 = vadd.f32 %v859, 1.0
    %v873 = vadd.f32 %v861, 1.0
    %v874 = vadd.f32 %v863, 1.0
    %v875 = vadd.f32 %v865, 1.0
    %v876 = vadd.f32 %v867, 1.0
    %v877 = vadd.f32 %v869, 1.0
    %v878 = vrcp.pop %v870
    %v879 = vmul.f32 1.0, %v878
    %v880 = vrcp.pop %v871
    %v881 = vmul.f32 1.0, %v880
    %v882 = vrcp.pop %v872
    %v883 = vmul.f32 1.0, %v882
    %v884 = vrcp.pop %v873
    %v885 = vmul.f32 1.0, %v884
    %v886 = vrcp.pop %v874
    %v887 = vmul.f32 1.0, %v886
    %v888 = vrcp.pop %v875
    %v889 = vmul.f32 1.0, %v888
    %v890 = vrcp.pop %v876
    %v891 = vmul.f32 1.0, %v890
    %v892 = vrcp.pop %v877
    %v893 = vmul.f32 1.0, %v892
    %v894 = vtanh.pop %v838
    %v895 = vtanh.pop %v839
    %v896 = vtanh.pop %v840
    %v897 = vtanh.pop %v841
    %v898 = vtanh.pop %v842
    %v899 = vtanh.pop %v843
    %v900 = vtanh.pop %v844
    %v901 = vtanh.pop %v845
    %v910 = vrot.slane %v682, 7
    %v911 = vrot.slane %v683, 7
    %v912 = vrot.slane %v684, 7
    %v913 = vrot.slane %v685, 7
    %v914 = vrot.slane %v686, 7
    %v915 = vrot.slane %v687, 7
    %v916 = vrot.slane %v688, 7
    %v917 = vrot.slane %v689, 7
    %v926 = vmul.f32 %v879, %v910
    %v927 = vmul.f32 %v881, %v911
    %v928 = vmul.f32 %v883, %v912
    %v929 = vmul.f32 %v885, %v913
    %v930 = vmul.f32 %v887, %v914
    %v931 = vmul.f32 %v889, %v915
    %v932 = vmul.f32 %v891, %v916
    %v933 = vmul.f32 %v893, %v917
    %942 = vrot.lane.b32.xlu0 %v894, 96
    %v943 = vpop.permute.xlu0 %942
    %944 = vrot.lane.b32.xlu0 %v895, 96
    %v945 = vpop.permute.xlu0 %944
    %946 = vrot.lane.b32.xlu0 %v896, 96
    %v947 = vpop.permute.xlu0 %946
    %948 = vrot.lane.b32.xlu0 %v897, 96
    %v949 = vpop.permute.xlu0 %948
    %950 = vrot.lane.b32.xlu0 %v898, 96
    %v951 = vpop.permute.xlu0 %950
    %952 = vrot.lane.b32.xlu0 %v899, 96
    %v953 = vpop.permute.xlu0 %952
    %954 = vrot.lane.b32.xlu0 %v900, 96
    %v955 = vpop.permute.xlu0 %954
    %956 = vrot.lane.b32.xlu0 %v901, 96
    %v957 = vpop.permute.xlu0 %956
    %v966 = vmul.f32 %v879, %v943
    %v967 = vmul.f32 %v881, %v945
    %v968 = vmul.f32 %v883, %v947
    %v969 = vmul.f32 %v885, %v949
    %v970 = vmul.f32 %v887, %v951
    %v971 = vmul.f32 %v889, %v953
    %v972 = vmul.f32 %v891, %v955
    %v973 = vmul.f32 %v893, %v957
    %982 = vrot.lane.b32.xlu0 %v966, 16
    %v983 = vpop.permute.xlu0 %982
    %984 = vrot.lane.b32.xlu0 %v967, 16
    %v985 = vpop.permute.xlu0 %984
    %986 = vrot.lane.b32.xlu0 %v968, 16
    %v987 = vpop.permute.xlu0 %986
    %988 = vrot.lane.b32.xlu0 %v969, 16
    %v989 = vpop.permute.xlu0 %988
    %990 = vrot.lane.b32.xlu0 %v970, 16
    %v991 = vpop.permute.xlu0 %990
    %992 = vrot.lane.b32.xlu0 %v971, 16
    %v993 = vpop.permute.xlu0 %992
    %994 = vrot.lane.b32.xlu0 %v972, 16
    %v995 = vpop.permute.xlu0 %994
    %996 = vrot.lane.b32.xlu0 %v973, 16
    %v997 = vpop.permute.xlu0 %996
    %v1006 = vadd.f32 %v926, %v983
    %v1007 = vadd.f32 %v927, %v985
    %v1008 = vadd.f32 %v928, %v987
    %v1009 = vadd.f32 %v929, %v989
    %v1010 = vadd.f32 %v930, %v991
    %v1011 = vadd.f32 %v931, %v993
    %v1012 = vadd.f32 %v932, %v995
    %v1013 = vadd.f32 %v933, %v997
    %v1014 = vtanh.pop %v1006
    %v1015 = vtanh.pop %v1007
    %v1016 = vtanh.pop %v1008
    %v1017 = vtanh.pop %v1009
    %v1018 = vtanh.pop %v1010
    %v1019 = vtanh.pop %v1011
    %v1020 = vtanh.pop %v1012
    %v1021 = vtanh.pop %v1013
    %1030 = vrot.lane.b32.xlu0 %v1014, 32
    %v1031 = vpop.permute.xlu0 %1030
    %1032 = vrot.lane.b32.xlu0 %v1015, 32
    %v1033 = vpop.permute.xlu0 %1032
    %1034 = vrot.lane.b32.xlu0 %v1016, 32
    %v1035 = vpop.permute.xlu0 %1034
    %1036 = vrot.lane.b32.xlu0 %v1017, 32
    %v1037 = vpop.permute.xlu0 %1036
    %1038 = vrot.lane.b32.xlu0 %v1018, 32
    %v1039 = vpop.permute.xlu0 %1038
    %1040 = vrot.lane.b32.xlu0 %v1019, 32
    %v1041 = vpop.permute.xlu0 %1040
    %1042 = vrot.lane.b32.xlu0 %v1020, 32
    %v1043 = vpop.permute.xlu0 %1042
    %1044 = vrot.lane.b32.xlu0 %v1021, 32
    %v1045 = vpop.permute.xlu0 %1044
    %v1054 = vmul.f32 %v879, %v1031
    %v1055 = vmul.f32 %v881, %v1033
    %v1056 = vmul.f32 %v883, %v1035
    %v1057 = vmul.f32 %v885, %v1037
    %v1058 = vmul.f32 %v887, %v1039
    %v1059 = vmul.f32 %v889, %v1041
    %v1060 = vmul.f32 %v891, %v1043
    %v1061 = vmul.f32 %v893, %v1045
    %v1062 = vpack.c.bf16 %v1054, %v1054
    %v1063 = vpack.c.bf16 %v1055, %v1055
    %v1064 = vpack.c.bf16 %v1056, %v1056
    %v1065 = vpack.c.bf16 %v1057, %v1057
    %v1066 = vpack.c.bf16 %v1058, %v1058
    %v1067 = vpack.c.bf16 %v1059, %v1059
    %v1068 = vpack.c.bf16 %v1060, %v1060
    %v1069 = vpack.c.bf16 %v1061, %v1061
    %v1078 = vunpack.c.l.b16 %v1062
    %v1079 = vunpack.c.l.b16 %v1063
    %v1080 = vunpack.c.l.b16 %v1064
    %v1081 = vunpack.c.l.b16 %v1065
    %v1082 = vunpack.c.l.b16 %v1066
    %v1083 = vunpack.c.l.b16 %v1067
    %v1084 = vunpack.c.l.b16 %v1068
    %v1085 = vunpack.c.l.b16 %v1069
    %v1086 = vrot.slane %v1078, 2
    %v1087 = vrot.slane %v1079, 1
    %v1088 = vsel %vm432, %v1087, %v1086
    %v1089 = vsel %vm435, %v1080, %v1088
    %v1090 = vrot.slane %v1081, 7
    %v1091 = vsel %vm438, %v1090, %v1089
    %v1092 = vrot.slane %v1082, 6
    %v1093 = vsel %vm441, %v1092, %v1091
    %v1094 = vrot.slane %v1083, 5
    %v1095 = vsel %vm444, %v1094, %v1093
    %v1096 = vrot.slane %v1084, 4
    %v1097 = vsel %vm447, %v1096, %v1095
    %v1098 = vrot.slane %v1085, 3
    %v1099 = vsel %vm450, %v1098, %v1097
    %v1100 = vpack.c.b16 %v1099, %v1099
    %1101 = vrot.lane.b32.xlu0 %v1100, 80
    %v1102 = vpop.permute.xlu0 %1101
    %v1104 = vsel %vm62, %v1102, 0
    %1106 = vmatprep.subr.bf16.mxu0 0
    %1107 = vmatpush1.bf16.msra.mxu0 %v146
    %1108 = vmatprep.subr.bf16.mxu0 0
    %1109 = vmatpush1.bf16.msra.mxu0 0
    %1110 = vmatprep.subr.bf16.mxu0 0
    %1111 = vmatpush1.bf16.msra.mxu0 0
    %1112 = vmatprep.subr.bf16.mxu0 0
    %1113 = vmatpush1.bf16.msra.mxu0 0
    %1114 = vmatprep.subr.bf16.mxu0 0
    %1115 = vmatpush1.bf16.msra.mxu0 0
    %1116 = vmatprep.subr.bf16.mxu0 0
    %1117 = vmatpush1.bf16.msra.mxu0 0
    %1118 = vmatprep.subr.bf16.mxu0 0
    %1119 = vmatpush1.bf16.msra.mxu0 0
    %1120 = vmatprep.subr.bf16.mxu0 0
    %1121 = vmatpush1.bf16.msra.mxu0 0
    %1122 = vmatprep.subr.bf16.mxu0 0
    %1123 = vmatpush1.bf16.msra.mxu0 0
    %1124 = vmatprep.subr.bf16.mxu0 0
    %1125 = vmatpush1.bf16.msra.mxu0 0
    %1126 = vmatprep.subr.bf16.mxu0 0
    %1127 = vmatpush1.bf16.msra.mxu0 0
    %1128 = vmatprep.subr.bf16.mxu0 0
    %1129 = vmatpush1.bf16.msra.mxu0 0
    %1130 = vmatprep.subr.bf16.mxu0 0
    %1131 = vmatpush1.bf16.msra.mxu0 0
    %1132 = vmatprep.subr.bf16.mxu0 0
    %1133 = vmatpush1.bf16.msra.mxu0 0
    %1134 = vmatprep.subr.bf16.mxu0 0
    %1135 = vmatpush1.bf16.msra.mxu0 0
    %1136 = vmatprep.subr.bf16.mxu0 0
    %1137 = vmatpush1.bf16.msra.mxu0 0
    %1138 = vmatprep.mubr.bf16.mxu0 0
    %1139 = vmatmul.mubr.bf16.gmra.mrb[0].mxu0 %v1104
    %v1140 = vpop.f32.mrb[0].mxu0
    %v1141 = vadd.f32 0.0, %v1140
    %v1142 = vpop.f32.mrb[0].mxu0
    %v1143 = vpop.f32.mrb[0].mxu0
    %v1144 = vpop.f32.mrb[0].mxu0
    %1145 = vdwg.mxu0
    %v1147 = vrot.slane %v1141, 5
    %v1148 = vrot.slane %v1141, 6
    %v1149 = vrot.slane %v1141, 7
    %v1150 = vrot.slane %v1141, 1
    %v1151 = vrot.slane %v1141, 2
    %v1152 = vrot.slane %v1141, 3
    %v1153 = vrot.slane %v1141, 4
    %v1162 = vadd.f32 %v110, %v1147
    %v1163 = vadd.f32 %v113, %v1148
    %v1164 = vadd.f32 %v118, %v1149
    %v1165 = vadd.f32 %v121, %v1141
    %v1166 = vadd.f32 %v126, %v1150
    %v1167 = vadd.f32 %v129, %v1151
    %v1168 = vadd.f32 %v134, %v1152
    %v1169 = vadd.f32 %v137, %v1153
    %v1170 = vxor.u32 %v1162, 2147483648
    %v1171 = vxor.u32 %v1163, 2147483648
    %v1172 = vxor.u32 %v1164, 2147483648
    %v1173 = vxor.u32 %v1165, 2147483648
    %v1174 = vxor.u32 %v1166, 2147483648
    %v1175 = vxor.u32 %v1167, 2147483648
    %v1176 = vxor.u32 %v1168, 2147483648
    %v1177 = vxor.u32 %v1169, 2147483648
    %v1178 = vmul.f32 %v1170, 1.442695
    %v1179 = vpow.pop %v1178
    %v1180 = vmul.f32 %v1171, 1.442695
    %v1181 = vpow.pop %v1180
    %v1182 = vmul.f32 %v1172, 1.442695
    %v1183 = vpow.pop %v1182
    %v1184 = vmul.f32 %v1173, 1.442695
    %v1185 = vpow.pop %v1184
    %v1186 = vmul.f32 %v1174, 1.442695
    %v1187 = vpow.pop %v1186
    %v1188 = vmul.f32 %v1175, 1.442695
    %v1189 = vpow.pop %v1188
    %v1190 = vmul.f32 %v1176, 1.442695
    %v1191 = vpow.pop %v1190
    %v1192 = vmul.f32 %v1177, 1.442695
    %v1193 = vpow.pop %v1192
    %v1194 = vadd.f32 %v1179, 1.0
    %v1195 = vadd.f32 %v1181, 1.0
    %v1196 = vadd.f32 %v1183, 1.0
    %v1197 = vadd.f32 %v1185, 1.0
    %v1198 = vadd.f32 %v1187, 1.0
    %v1199 = vadd.f32 %v1189, 1.0
    %v1200 = vadd.f32 %v1191, 1.0
    %v1201 = vadd.f32 %v1193, 1.0
    %v1202 = vrcp.pop %v1194
    %v1203 = vmul.f32 1.0, %v1202
    %v1204 = vrcp.pop %v1195
    %v1205 = vmul.f32 1.0, %v1204
    %v1206 = vrcp.pop %v1196
    %v1207 = vmul.f32 1.0, %v1206
    %v1208 = vrcp.pop %v1197
    %v1209 = vmul.f32 1.0, %v1208
    %v1210 = vrcp.pop %v1198
    %v1211 = vmul.f32 1.0, %v1210
    %v1212 = vrcp.pop %v1199
    %v1213 = vmul.f32 1.0, %v1212
    %v1214 = vrcp.pop %v1200
    %v1215 = vmul.f32 1.0, %v1214
    %v1216 = vrcp.pop %v1201
    %v1217 = vmul.f32 1.0, %v1216
    %v1218 = vtanh.pop %v1162
    %v1219 = vtanh.pop %v1163
    %v1220 = vtanh.pop %v1164
    %v1221 = vtanh.pop %v1165
    %v1222 = vtanh.pop %v1166
    %v1223 = vtanh.pop %v1167
    %v1224 = vtanh.pop %v1168
    %v1225 = vtanh.pop %v1169
    %v1234 = vrot.slane %v1006, 7
    %v1235 = vrot.slane %v1007, 7
    %v1236 = vrot.slane %v1008, 7
    %v1237 = vrot.slane %v1009, 7
    %v1238 = vrot.slane %v1010, 7
    %v1239 = vrot.slane %v1011, 7
    %v1240 = vrot.slane %v1012, 7
    %v1241 = vrot.slane %v1013, 7
    %v1250 = vmul.f32 %v1203, %v1234
    %v1251 = vmul.f32 %v1205, %v1235
    %v1252 = vmul.f32 %v1207, %v1236
    %v1253 = vmul.f32 %v1209, %v1237
    %v1254 = vmul.f32 %v1211, %v1238
    %v1255 = vmul.f32 %v1213, %v1239
    %v1256 = vmul.f32 %v1215, %v1240
    %v1257 = vmul.f32 %v1217, %v1241
    %1266 = vrot.lane.b32.xlu0 %v1218, 96
    %v1267 = vpop.permute.xlu0 %1266
    %1268 = vrot.lane.b32.xlu0 %v1219, 96
    %v1269 = vpop.permute.xlu0 %1268
    %1270 = vrot.lane.b32.xlu0 %v1220, 96
    %v1271 = vpop.permute.xlu0 %1270
    %1272 = vrot.lane.b32.xlu0 %v1221, 96
    %v1273 = vpop.permute.xlu0 %1272
    %1274 = vrot.lane.b32.xlu0 %v1222, 96
    %v1275 = vpop.permute.xlu0 %1274
    %1276 = vrot.lane.b32.xlu0 %v1223, 96
    %v1277 = vpop.permute.xlu0 %1276
    %1278 = vrot.lane.b32.xlu0 %v1224, 96
    %v1279 = vpop.permute.xlu0 %1278
    %1280 = vrot.lane.b32.xlu0 %v1225, 96
    %v1281 = vpop.permute.xlu0 %1280
    %v1290 = vmul.f32 %v1203, %v1267
    %v1291 = vmul.f32 %v1205, %v1269
    %v1292 = vmul.f32 %v1207, %v1271
    %v1293 = vmul.f32 %v1209, %v1273
    %v1294 = vmul.f32 %v1211, %v1275
    %v1295 = vmul.f32 %v1213, %v1277
    %v1296 = vmul.f32 %v1215, %v1279
    %v1297 = vmul.f32 %v1217, %v1281
    %1306 = vrot.lane.b32.xlu0 %v1290, 16
    %v1307 = vpop.permute.xlu0 %1306
    %1308 = vrot.lane.b32.xlu0 %v1291, 16
    %v1309 = vpop.permute.xlu0 %1308
    %1310 = vrot.lane.b32.xlu0 %v1292, 16
    %v1311 = vpop.permute.xlu0 %1310
    %1312 = vrot.lane.b32.xlu0 %v1293, 16
    %v1313 = vpop.permute.xlu0 %1312
    %1314 = vrot.lane.b32.xlu0 %v1294, 16
    %v1315 = vpop.permute.xlu0 %1314
    %1316 = vrot.lane.b32.xlu0 %v1295, 16
    %v1317 = vpop.permute.xlu0 %1316
    %1318 = vrot.lane.b32.xlu0 %v1296, 16
    %v1319 = vpop.permute.xlu0 %1318
    %1320 = vrot.lane.b32.xlu0 %v1297, 16
    %v1321 = vpop.permute.xlu0 %1320
    %v1330 = vadd.f32 %v1250, %v1307
    %v1331 = vadd.f32 %v1251, %v1309
    %v1332 = vadd.f32 %v1252, %v1311
    %v1333 = vadd.f32 %v1253, %v1313
    %v1334 = vadd.f32 %v1254, %v1315
    %v1335 = vadd.f32 %v1255, %v1317
    %v1336 = vadd.f32 %v1256, %v1319
    %v1337 = vadd.f32 %v1257, %v1321
    %v1338 = vtanh.pop %v1330
    %v1339 = vtanh.pop %v1331
    %v1340 = vtanh.pop %v1332
    %v1341 = vtanh.pop %v1333
    %v1342 = vtanh.pop %v1334
    %v1343 = vtanh.pop %v1335
    %v1344 = vtanh.pop %v1336
    %v1345 = vtanh.pop %v1337
    %1354 = vrot.lane.b32.xlu0 %v1338, 32
    %v1355 = vpop.permute.xlu0 %1354
    %1356 = vrot.lane.b32.xlu0 %v1339, 32
    %v1357 = vpop.permute.xlu0 %1356
    %1358 = vrot.lane.b32.xlu0 %v1340, 32
    %v1359 = vpop.permute.xlu0 %1358
    %1360 = vrot.lane.b32.xlu0 %v1341, 32
    %v1361 = vpop.permute.xlu0 %1360
    %1362 = vrot.lane.b32.xlu0 %v1342, 32
    %v1363 = vpop.permute.xlu0 %1362
    %1364 = vrot.lane.b32.xlu0 %v1343, 32
    %v1365 = vpop.permute.xlu0 %1364
    %1366 = vrot.lane.b32.xlu0 %v1344, 32
    %v1367 = vpop.permute.xlu0 %1366
    %1368 = vrot.lane.b32.xlu0 %v1345, 32
    %v1369 = vpop.permute.xlu0 %1368
    %v1378 = vmul.f32 %v1203, %v1355
    %v1379 = vmul.f32 %v1205, %v1357
    %v1380 = vmul.f32 %v1207, %v1359
    %v1381 = vmul.f32 %v1209, %v1361
    %v1382 = vmul.f32 %v1211, %v1363
    %v1383 = vmul.f32 %v1213, %v1365
    %v1384 = vmul.f32 %v1215, %v1367
    %v1385 = vmul.f32 %v1217, %v1369
    %v1386 = vpack.c.bf16 %v1378, %v1378
    %v1387 = vpack.c.bf16 %v1379, %v1379
    %v1388 = vpack.c.bf16 %v1380, %v1380
    %v1389 = vpack.c.bf16 %v1381, %v1381
    %v1390 = vpack.c.bf16 %v1382, %v1382
    %v1391 = vpack.c.bf16 %v1383, %v1383
    %v1392 = vpack.c.bf16 %v1384, %v1384
    %v1393 = vpack.c.bf16 %v1385, %v1385
    %v1402 = vunpack.c.l.b16 %v1386
    %v1403 = vunpack.c.l.b16 %v1387
    %v1404 = vunpack.c.l.b16 %v1388
    %v1405 = vunpack.c.l.b16 %v1389
    %v1406 = vunpack.c.l.b16 %v1390
    %v1407 = vunpack.c.l.b16 %v1391
    %v1408 = vunpack.c.l.b16 %v1392
    %v1409 = vunpack.c.l.b16 %v1393
    %v1410 = vrot.slane %v1402, 3
    %v1411 = vrot.slane %v1403, 2
    %v1412 = vsel %vm432, %v1411, %v1410
    %v1413 = vrot.slane %v1404, 1
    %v1414 = vsel %vm435, %v1413, %v1412
    %v1415 = vsel %vm438, %v1405, %v1414
    %v1416 = vrot.slane %v1406, 7
    %v1417 = vsel %vm441, %v1416, %v1415
    %v1418 = vrot.slane %v1407, 6
    %v1419 = vsel %vm444, %v1418, %v1417
    %v1420 = vrot.slane %v1408, 5
    %v1421 = vsel %vm447, %v1420, %v1419
    %v1422 = vrot.slane %v1409, 4
    %v1423 = vsel %vm450, %v1422, %v1421
    %v1424 = vpack.c.b16 %v1423, %v1423
    %1425 = vrot.lane.b32.xlu0 %v1424, 80
    %v1426 = vpop.permute.xlu0 %1425
    %v1428 = vsel %vm62, %v1426, 0
    %1430 = vmatprep.subr.bf16.mxu0 0
    %1431 = vmatpush1.bf16.msra.mxu0 %v146
    %1432 = vmatprep.subr.bf16.mxu0 0
    %1433 = vmatpush1.bf16.msra.mxu0 0
    %1434 = vmatprep.subr.bf16.mxu0 0
    %1435 = vmatpush1.bf16.msra.mxu0 0
    %1436 = vmatprep.subr.bf16.mxu0 0
    %1437 = vmatpush1.bf16.msra.mxu0 0
    %1438 = vmatprep.subr.bf16.mxu0 0
    %1439 = vmatpush1.bf16.msra.mxu0 0
    %1440 = vmatprep.subr.bf16.mxu0 0
    %1441 = vmatpush1.bf16.msra.mxu0 0
    %1442 = vmatprep.subr.bf16.mxu0 0
    %1443 = vmatpush1.bf16.msra.mxu0 0
    %1444 = vmatprep.subr.bf16.mxu0 0
    %1445 = vmatpush1.bf16.msra.mxu0 0
    %1446 = vmatprep.subr.bf16.mxu0 0
    %1447 = vmatpush1.bf16.msra.mxu0 0
    %1448 = vmatprep.subr.bf16.mxu0 0
    %1449 = vmatpush1.bf16.msra.mxu0 0
    %1450 = vmatprep.subr.bf16.mxu0 0
    %1451 = vmatpush1.bf16.msra.mxu0 0
    %1452 = vmatprep.subr.bf16.mxu0 0
    %1453 = vmatpush1.bf16.msra.mxu0 0
    %1454 = vmatprep.subr.bf16.mxu0 0
    %1455 = vmatpush1.bf16.msra.mxu0 0
    %1456 = vmatprep.subr.bf16.mxu0 0
    %1457 = vmatpush1.bf16.msra.mxu0 0
    %1458 = vmatprep.subr.bf16.mxu0 0
    %1459 = vmatpush1.bf16.msra.mxu0 0
    %1460 = vmatprep.subr.bf16.mxu0 0
    %1461 = vmatpush1.bf16.msra.mxu0 0
    %1462 = vmatprep.mubr.bf16.mxu0 0
    %1463 = vmatmul.mubr.bf16.gmra.mrb[0].mxu0 %v1428
    %v1464 = vpop.f32.mrb[0].mxu0
    %v1465 = vadd.f32 0.0, %v1464
    %v1466 = vpop.f32.mrb[0].mxu0
    %v1467 = vpop.f32.mrb[0].mxu0
    %v1468 = vpop.f32.mrb[0].mxu0
    %1469 = vdwg.mxu0
    %v1471 = vrot.slane %v1465, 4
    %v1472 = vrot.slane %v1465, 5
    %v1473 = vrot.slane %v1465, 6
    %v1474 = vrot.slane %v1465, 7
    %v1475 = vrot.slane %v1465, 1
    %v1476 = vrot.slane %v1465, 2
    %v1477 = vrot.slane %v1465, 3
    %v1486 = vadd.f32 %v110, %v1471
    %v1487 = vadd.f32 %v113, %v1472
    %v1488 = vadd.f32 %v118, %v1473
    %v1489 = vadd.f32 %v121, %v1474
    %v1490 = vadd.f32 %v126, %v1465
    %v1491 = vadd.f32 %v129, %v1475
    %v1492 = vadd.f32 %v134, %v1476
    %v1493 = vadd.f32 %v137, %v1477
    %v1494 = vxor.u32 %v1486, 2147483648
    %v1495 = vxor.u32 %v1487, 2147483648
    %v1496 = vxor.u32 %v1488, 2147483648
    %v1497 = vxor.u32 %v1489, 2147483648
    %v1498 = vxor.u32 %v1490, 2147483648
    %v1499 = vxor.u32 %v1491, 2147483648
    %v1500 = vxor.u32 %v1492, 2147483648
    %v1501 = vxor.u32 %v1493, 2147483648
    %v1502 = vmul.f32 %v1494, 1.442695
    %v1503 = vpow.pop %v1502
    %v1504 = vmul.f32 %v1495, 1.442695
    %v1505 = vpow.pop %v1504
    %v1506 = vmul.f32 %v1496, 1.442695
    %v1507 = vpow.pop %v1506
    %v1508 = vmul.f32 %v1497, 1.442695
    %v1509 = vpow.pop %v1508
    %v1510 = vmul.f32 %v1498, 1.442695
    %v1511 = vpow.pop %v1510
    %v1512 = vmul.f32 %v1499, 1.442695
    %v1513 = vpow.pop %v1512
    %v1514 = vmul.f32 %v1500, 1.442695
    %v1515 = vpow.pop %v1514
    %v1516 = vmul.f32 %v1501, 1.442695
    %v1517 = vpow.pop %v1516
    %v1518 = vadd.f32 %v1503, 1.0
    %v1519 = vadd.f32 %v1505, 1.0
    %v1520 = vadd.f32 %v1507, 1.0
    %v1521 = vadd.f32 %v1509, 1.0
    %v1522 = vadd.f32 %v1511, 1.0
    %v1523 = vadd.f32 %v1513, 1.0
    %v1524 = vadd.f32 %v1515, 1.0
    %v1525 = vadd.f32 %v1517, 1.0
    %v1526 = vrcp.pop %v1518
    %v1527 = vmul.f32 1.0, %v1526
    %v1528 = vrcp.pop %v1519
    %v1529 = vmul.f32 1.0, %v1528
    %v1530 = vrcp.pop %v1520
    %v1531 = vmul.f32 1.0, %v1530
    %v1532 = vrcp.pop %v1521
    %v1533 = vmul.f32 1.0, %v1532
    %v1534 = vrcp.pop %v1522
    %v1535 = vmul.f32 1.0, %v1534
    %v1536 = vrcp.pop %v1523
    %v1537 = vmul.f32 1.0, %v1536
    %v1538 = vrcp.pop %v1524
    %v1539 = vmul.f32 1.0, %v1538
    %v1540 = vrcp.pop %v1525
    %v1541 = vmul.f32 1.0, %v1540
    %v1542 = vtanh.pop %v1486
    %v1543 = vtanh.pop %v1487
    %v1544 = vtanh.pop %v1488
    %v1545 = vtanh.pop %v1489
    %v1546 = vtanh.pop %v1490
    %v1547 = vtanh.pop %v1491
    %v1548 = vtanh.pop %v1492
    %v1549 = vtanh.pop %v1493
    %v1558 = vrot.slane %v1330, 7
    %v1559 = vrot.slane %v1331, 7
    %v1560 = vrot.slane %v1332, 7
    %v1561 = vrot.slane %v1333, 7
    %v1562 = vrot.slane %v1334, 7
    %v1563 = vrot.slane %v1335, 7
    %v1564 = vrot.slane %v1336, 7
    %v1565 = vrot.slane %v1337, 7
    %v1574 = vmul.f32 %v1527, %v1558
    %v1575 = vmul.f32 %v1529, %v1559
    %v1576 = vmul.f32 %v1531, %v1560
    %v1577 = vmul.f32 %v1533, %v1561
    %v1578 = vmul.f32 %v1535, %v1562
    %v1579 = vmul.f32 %v1537, %v1563
    %v1580 = vmul.f32 %v1539, %v1564
    %v1581 = vmul.f32 %v1541, %v1565
    %1590 = vrot.lane.b32.xlu0 %v1542, 96
    %v1591 = vpop.permute.xlu0 %1590
    %1592 = vrot.lane.b32.xlu0 %v1543, 96
    %v1593 = vpop.permute.xlu0 %1592
    %1594 = vrot.lane.b32.xlu0 %v1544, 96
    %v1595 = vpop.permute.xlu0 %1594
    %1596 = vrot.lane.b32.xlu0 %v1545, 96
    %v1597 = vpop.permute.xlu0 %1596
    %1598 = vrot.lane.b32.xlu0 %v1546, 96
    %v1599 = vpop.permute.xlu0 %1598
    %1600 = vrot.lane.b32.xlu0 %v1547, 96
    %v1601 = vpop.permute.xlu0 %1600
    %1602 = vrot.lane.b32.xlu0 %v1548, 96
    %v1603 = vpop.permute.xlu0 %1602
    %1604 = vrot.lane.b32.xlu0 %v1549, 96
    %v1605 = vpop.permute.xlu0 %1604
    %v1614 = vmul.f32 %v1527, %v1591
    %v1615 = vmul.f32 %v1529, %v1593
    %v1616 = vmul.f32 %v1531, %v1595
    %v1617 = vmul.f32 %v1533, %v1597
    %v1618 = vmul.f32 %v1535, %v1599
    %v1619 = vmul.f32 %v1537, %v1601
    %v1620 = vmul.f32 %v1539, %v1603
    %v1621 = vmul.f32 %v1541, %v1605
    %1630 = vrot.lane.b32.xlu0 %v1614, 16
    %v1631 = vpop.permute.xlu0 %1630
    %1632 = vrot.lane.b32.xlu0 %v1615, 16
    %v1633 = vpop.permute.xlu0 %1632
    %1634 = vrot.lane.b32.xlu0 %v1616, 16
    %v1635 = vpop.permute.xlu0 %1634
    %1636 = vrot.lane.b32.xlu0 %v1617, 16
    %v1637 = vpop.permute.xlu0 %1636
    %1638 = vrot.lane.b32.xlu0 %v1618, 16
    %v1639 = vpop.permute.xlu0 %1638
    %1640 = vrot.lane.b32.xlu0 %v1619, 16
    %v1641 = vpop.permute.xlu0 %1640
    %1642 = vrot.lane.b32.xlu0 %v1620, 16
    %v1643 = vpop.permute.xlu0 %1642
    %1644 = vrot.lane.b32.xlu0 %v1621, 16
    %v1645 = vpop.permute.xlu0 %1644
    %v1654 = vadd.f32 %v1574, %v1631
    %v1655 = vadd.f32 %v1575, %v1633
    %v1656 = vadd.f32 %v1576, %v1635
    %v1657 = vadd.f32 %v1577, %v1637
    %v1658 = vadd.f32 %v1578, %v1639
    %v1659 = vadd.f32 %v1579, %v1641
    %v1660 = vadd.f32 %v1580, %v1643
    %v1661 = vadd.f32 %v1581, %v1645
    %v1662 = vtanh.pop %v1654
    %v1663 = vtanh.pop %v1655
    %v1664 = vtanh.pop %v1656
    %v1665 = vtanh.pop %v1657
    %v1666 = vtanh.pop %v1658
    %v1667 = vtanh.pop %v1659
    %v1668 = vtanh.pop %v1660
    %v1669 = vtanh.pop %v1661
    %1678 = vrot.lane.b32.xlu0 %v1662, 32
    %v1679 = vpop.permute.xlu0 %1678
    %1680 = vrot.lane.b32.xlu0 %v1663, 32
    %v1681 = vpop.permute.xlu0 %1680
    %1682 = vrot.lane.b32.xlu0 %v1664, 32
    %v1683 = vpop.permute.xlu0 %1682
    %1684 = vrot.lane.b32.xlu0 %v1665, 32
    %v1685 = vpop.permute.xlu0 %1684
    %1686 = vrot.lane.b32.xlu0 %v1666, 32
    %v1687 = vpop.permute.xlu0 %1686
    %1688 = vrot.lane.b32.xlu0 %v1667, 32
    %v1689 = vpop.permute.xlu0 %1688
    %1690 = vrot.lane.b32.xlu0 %v1668, 32
    %v1691 = vpop.permute.xlu0 %1690
    %1692 = vrot.lane.b32.xlu0 %v1669, 32
    %v1693 = vpop.permute.xlu0 %1692
    %v1702 = vmul.f32 %v1527, %v1679
    %v1703 = vmul.f32 %v1529, %v1681
    %v1704 = vmul.f32 %v1531, %v1683
    %v1705 = vmul.f32 %v1533, %v1685
    %v1706 = vmul.f32 %v1535, %v1687
    %v1707 = vmul.f32 %v1537, %v1689
    %v1708 = vmul.f32 %v1539, %v1691
    %v1709 = vmul.f32 %v1541, %v1693
    %v1710 = vpack.c.bf16 %v1702, %v1702
    %v1711 = vpack.c.bf16 %v1703, %v1703
    %v1712 = vpack.c.bf16 %v1704, %v1704
    %v1713 = vpack.c.bf16 %v1705, %v1705
    %v1714 = vpack.c.bf16 %v1706, %v1706
    %v1715 = vpack.c.bf16 %v1707, %v1707
    %v1716 = vpack.c.bf16 %v1708, %v1708
    %v1717 = vpack.c.bf16 %v1709, %v1709
    %v1726 = vunpack.c.l.b16 %v1710
    %v1727 = vunpack.c.l.b16 %v1711
    %v1728 = vunpack.c.l.b16 %v1712
    %v1729 = vunpack.c.l.b16 %v1713
    %v1730 = vunpack.c.l.b16 %v1714
    %v1731 = vunpack.c.l.b16 %v1715
    %v1732 = vunpack.c.l.b16 %v1716
    %v1733 = vunpack.c.l.b16 %v1717
    %v1734 = vrot.slane %v1726, 4
    %v1735 = vrot.slane %v1727, 3
    %v1736 = vsel %vm432, %v1735, %v1734
    %v1737 = vrot.slane %v1728, 2
    %v1738 = vsel %vm435, %v1737, %v1736
    %v1739 = vrot.slane %v1729, 1
    %v1740 = vsel %vm438, %v1739, %v1738
    %v1741 = vsel %vm441, %v1730, %v1740
    %v1742 = vrot.slane %v1731, 7
    %v1743 = vsel %vm444, %v1742, %v1741
    %v1744 = vrot.slane %v1732, 6
    %v1745 = vsel %vm447, %v1744, %v1743
    %v1746 = vrot.slane %v1733, 5
    %v1747 = vsel %vm450, %v1746, %v1745
    %v1748 = vpack.c.b16 %v1747, %v1747
    %1749 = vrot.lane.b32.xlu0 %v1748, 80
    %v1750 = vpop.permute.xlu0 %1749
    %v1752 = vsel %vm62, %v1750, 0
    %1754 = vmatprep.subr.bf16.mxu0 0
    %1755 = vmatpush1.bf16.msra.mxu0 %v146
    %1756 = vmatprep.subr.bf16.mxu0 0
    %1757 = vmatpush1.bf16.msra.mxu0 0
    %1758 = vmatprep.subr.bf16.mxu0 0
    %1759 = vmatpush1.bf16.msra.mxu0 0
    %1760 = vmatprep.subr.bf16.mxu0 0
    %1761 = vmatpush1.bf16.msra.mxu0 0
    %1762 = vmatprep.subr.bf16.mxu0 0
    %1763 = vmatpush1.bf16.msra.mxu0 0
    %1764 = vmatprep.subr.bf16.mxu0 0
    %1765 = vmatpush1.bf16.msra.mxu0 0
    %1766 = vmatprep.subr.bf16.mxu0 0
    %1767 = vmatpush1.bf16.msra.mxu0 0
    %1768 = vmatprep.subr.bf16.mxu0 0
    %1769 = vmatpush1.bf16.msra.mxu0 0
    %1770 = vmatprep.subr.bf16.mxu0 0
    %1771 = vmatpush1.bf16.msra.mxu0 0
    %1772 = vmatprep.subr.bf16.mxu0 0
    %1773 = vmatpush1.bf16.msra.mxu0 0
    %1774 = vmatprep.subr.bf16.mxu0 0
    %1775 = vmatpush1.bf16.msra.mxu0 0
    %1776 = vmatprep.subr.bf16.mxu0 0
    %1777 = vmatpush1.bf16.msra.mxu0 0
    %1778 = vmatprep.subr.bf16.mxu0 0
    %1779 = vmatpush1.bf16.msra.mxu0 0
    %1780 = vmatprep.subr.bf16.mxu0 0
    %1781 = vmatpush1.bf16.msra.mxu0 0
    %1782 = vmatprep.subr.bf16.mxu0 0
    %1783 = vmatpush1.bf16.msra.mxu0 0
    %1784 = vmatprep.subr.bf16.mxu0 0
    %1785 = vmatpush1.bf16.msra.mxu0 0
    %1786 = vmatprep.mubr.bf16.mxu0 0
    %1787 = vmatmul.mubr.bf16.gmra.mrb[0].mxu0 %v1752
    %v1788 = vpop.f32.mrb[0].mxu0
    %v1789 = vadd.f32 0.0, %v1788
    %v1790 = vpop.f32.mrb[0].mxu0
    %v1791 = vpop.f32.mrb[0].mxu0
    %v1792 = vpop.f32.mrb[0].mxu0
    %1793 = vdwg.mxu0
    %v1795 = vrot.slane %v1789, 3
    %v1796 = vrot.slane %v1789, 4
    %v1797 = vrot.slane %v1789, 5
    %v1798 = vrot.slane %v1789, 6
    %v1799 = vrot.slane %v1789, 7
    %v1800 = vrot.slane %v1789, 1
    %v1801 = vrot.slane %v1789, 2
    %v1810 = vadd.f32 %v110, %v1795
    %v1811 = vadd.f32 %v113, %v1796
    %v1812 = vadd.f32 %v118, %v1797
    %v1813 = vadd.f32 %v121, %v1798
    %v1814 = vadd.f32 %v126, %v1799
    %v1815 = vadd.f32 %v129, %v1789
    %v1816 = vadd.f32 %v134, %v1800
    %v1817 = vadd.f32 %v137, %v1801
    %v1818 = vxor.u32 %v1810, 2147483648
    %v1819 = vxor.u32 %v1811, 2147483648
    %v1820 = vxor.u32 %v1812, 2147483648
    %v1821 = vxor.u32 %v1813, 2147483648
    %v1822 = vxor.u32 %v1814, 2147483648
    %v1823 = vxor.u32 %v1815, 2147483648
    %v1824 = vxor.u32 %v1816, 2147483648
    %v1825 = vxor.u32 %v1817, 2147483648
    %v1826 = vmul.f32 %v1818, 1.442695
    %v1827 = vpow.pop %v1826
    %v1828 = vmul.f32 %v1819, 1.442695
    %v1829 = vpow.pop %v1828
    %v1830 = vmul.f32 %v1820, 1.442695
    %v1831 = vpow.pop %v1830
    %v1832 = vmul.f32 %v1821, 1.442695
    %v1833 = vpow.pop %v1832
    %v1834 = vmul.f32 %v1822, 1.442695
    %v1835 = vpow.pop %v1834
    %v1836 = vmul.f32 %v1823, 1.442695
    %v1837 = vpow.pop %v1836
    %v1838 = vmul.f32 %v1824, 1.442695
    %v1839 = vpow.pop %v1838
    %v1840 = vmul.f32 %v1825, 1.442695
    %v1841 = vpow.pop %v1840
    %v1842 = vadd.f32 %v1827, 1.0
    %v1843 = vadd.f32 %v1829, 1.0
    %v1844 = vadd.f32 %v1831, 1.0
    %v1845 = vadd.f32 %v1833, 1.0
    %v1846 = vadd.f32 %v1835, 1.0
    %v1847 = vadd.f32 %v1837, 1.0
    %v1848 = vadd.f32 %v1839, 1.0
    %v1849 = vadd.f32 %v1841, 1.0
    %v1850 = vrcp.pop %v1842
    %v1851 = vmul.f32 1.0, %v1850
    %v1852 = vrcp.pop %v1843
    %v1853 = vmul.f32 1.0, %v1852
    %v1854 = vrcp.pop %v1844
    %v1855 = vmul.f32 1.0, %v1854
    %v1856 = vrcp.pop %v1845
    %v1857 = vmul.f32 1.0, %v1856
    %v1858 = vrcp.pop %v1846
    %v1859 = vmul.f32 1.0, %v1858
    %v1860 = vrcp.pop %v1847
    %v1861 = vmul.f32 1.0, %v1860
    %v1862 = vrcp.pop %v1848
    %v1863 = vmul.f32 1.0, %v1862
    %v1864 = vrcp.pop %v1849
    %v1865 = vmul.f32 1.0, %v1864
    %v1866 = vtanh.pop %v1810
    %v1867 = vtanh.pop %v1811
    %v1868 = vtanh.pop %v1812
    %v1869 = vtanh.pop %v1813
    %v1870 = vtanh.pop %v1814
    %v1871 = vtanh.pop %v1815
    %v1872 = vtanh.pop %v1816
    %v1873 = vtanh.pop %v1817
    %v1882 = vrot.slane %v1654, 7
    %v1883 = vrot.slane %v1655, 7
    %v1884 = vrot.slane %v1656, 7
    %v1885 = vrot.slane %v1657, 7
    %v1886 = vrot.slane %v1658, 7
    %v1887 = vrot.slane %v1659, 7
    %v1888 = vrot.slane %v1660, 7
    %v1889 = vrot.slane %v1661, 7
    %v1898 = vmul.f32 %v1851, %v1882
    %v1899 = vmul.f32 %v1853, %v1883
    %v1900 = vmul.f32 %v1855, %v1884
    %v1901 = vmul.f32 %v1857, %v1885
    %v1902 = vmul.f32 %v1859, %v1886
    %v1903 = vmul.f32 %v1861, %v1887
    %v1904 = vmul.f32 %v1863, %v1888
    %v1905 = vmul.f32 %v1865, %v1889
    %1914 = vrot.lane.b32.xlu0 %v1866, 96
    %v1915 = vpop.permute.xlu0 %1914
    %1916 = vrot.lane.b32.xlu0 %v1867, 96
    %v1917 = vpop.permute.xlu0 %1916
    %1918 = vrot.lane.b32.xlu0 %v1868, 96
    %v1919 = vpop.permute.xlu0 %1918
    %1920 = vrot.lane.b32.xlu0 %v1869, 96
    %v1921 = vpop.permute.xlu0 %1920
    %1922 = vrot.lane.b32.xlu0 %v1870, 96
    %v1923 = vpop.permute.xlu0 %1922
    %1924 = vrot.lane.b32.xlu0 %v1871, 96
    %v1925 = vpop.permute.xlu0 %1924
    %1926 = vrot.lane.b32.xlu0 %v1872, 96
    %v1927 = vpop.permute.xlu0 %1926
    %1928 = vrot.lane.b32.xlu0 %v1873, 96
    %v1929 = vpop.permute.xlu0 %1928
    %v1938 = vmul.f32 %v1851, %v1915
    %v1939 = vmul.f32 %v1853, %v1917
    %v1940 = vmul.f32 %v1855, %v1919
    %v1941 = vmul.f32 %v1857, %v1921
    %v1942 = vmul.f32 %v1859, %v1923
    %v1943 = vmul.f32 %v1861, %v1925
    %v1944 = vmul.f32 %v1863, %v1927
    %v1945 = vmul.f32 %v1865, %v1929
    %1954 = vrot.lane.b32.xlu0 %v1938, 16
    %v1955 = vpop.permute.xlu0 %1954
    %1956 = vrot.lane.b32.xlu0 %v1939, 16
    %v1957 = vpop.permute.xlu0 %1956
    %1958 = vrot.lane.b32.xlu0 %v1940, 16
    %v1959 = vpop.permute.xlu0 %1958
    %1960 = vrot.lane.b32.xlu0 %v1941, 16
    %v1961 = vpop.permute.xlu0 %1960
    %1962 = vrot.lane.b32.xlu0 %v1942, 16
    %v1963 = vpop.permute.xlu0 %1962
    %1964 = vrot.lane.b32.xlu0 %v1943, 16
    %v1965 = vpop.permute.xlu0 %1964
    %1966 = vrot.lane.b32.xlu0 %v1944, 16
    %v1967 = vpop.permute.xlu0 %1966
    %1968 = vrot.lane.b32.xlu0 %v1945, 16
    %v1969 = vpop.permute.xlu0 %1968
    %v1978 = vadd.f32 %v1898, %v1955
    %v1979 = vadd.f32 %v1899, %v1957
    %v1980 = vadd.f32 %v1900, %v1959
    %v1981 = vadd.f32 %v1901, %v1961
    %v1982 = vadd.f32 %v1902, %v1963
    %v1983 = vadd.f32 %v1903, %v1965
    %v1984 = vadd.f32 %v1904, %v1967
    %v1985 = vadd.f32 %v1905, %v1969
    %v1986 = vtanh.pop %v1978
    %v1987 = vtanh.pop %v1979
    %v1988 = vtanh.pop %v1980
    %v1989 = vtanh.pop %v1981
    %v1990 = vtanh.pop %v1982
    %v1991 = vtanh.pop %v1983
    %v1992 = vtanh.pop %v1984
    %v1993 = vtanh.pop %v1985
    %2002 = vrot.lane.b32.xlu0 %v1986, 32
    %v2003 = vpop.permute.xlu0 %2002
    %2004 = vrot.lane.b32.xlu0 %v1987, 32
    %v2005 = vpop.permute.xlu0 %2004
    %2006 = vrot.lane.b32.xlu0 %v1988, 32
    %v2007 = vpop.permute.xlu0 %2006
    %2008 = vrot.lane.b32.xlu0 %v1989, 32
    %v2009 = vpop.permute.xlu0 %2008
    %2010 = vrot.lane.b32.xlu0 %v1990, 32
    %v2011 = vpop.permute.xlu0 %2010
    %2012 = vrot.lane.b32.xlu0 %v1991, 32
    %v2013 = vpop.permute.xlu0 %2012
    %2014 = vrot.lane.b32.xlu0 %v1992, 32
    %v2015 = vpop.permute.xlu0 %2014
    %2016 = vrot.lane.b32.xlu0 %v1993, 32
    %v2017 = vpop.permute.xlu0 %2016
    %v2026 = vmul.f32 %v1851, %v2003
    %v2027 = vmul.f32 %v1853, %v2005
    %v2028 = vmul.f32 %v1855, %v2007
    %v2029 = vmul.f32 %v1857, %v2009
    %v2030 = vmul.f32 %v1859, %v2011
    %v2031 = vmul.f32 %v1861, %v2013
    %v2032 = vmul.f32 %v1863, %v2015
    %v2033 = vmul.f32 %v1865, %v2017
    %v2034 = vpack.c.bf16 %v2026, %v2026
    %v2035 = vpack.c.bf16 %v2027, %v2027
    %v2036 = vpack.c.bf16 %v2028, %v2028
    %v2037 = vpack.c.bf16 %v2029, %v2029
    %v2038 = vpack.c.bf16 %v2030, %v2030
    %v2039 = vpack.c.bf16 %v2031, %v2031
    %v2040 = vpack.c.bf16 %v2032, %v2032
    %v2041 = vpack.c.bf16 %v2033, %v2033
    %v2050 = vunpack.c.l.b16 %v2034
    %v2051 = vunpack.c.l.b16 %v2035
    %v2052 = vunpack.c.l.b16 %v2036
    %v2053 = vunpack.c.l.b16 %v2037
    %v2054 = vunpack.c.l.b16 %v2038
    %v2055 = vunpack.c.l.b16 %v2039
    %v2056 = vunpack.c.l.b16 %v2040
    %v2057 = vunpack.c.l.b16 %v2041
    %v2058 = vrot.slane %v2050, 5
    %v2059 = vrot.slane %v2051, 4
    %v2060 = vsel %vm432, %v2059, %v2058
    %v2061 = vrot.slane %v2052, 3
    %v2062 = vsel %vm435, %v2061, %v2060
    %v2063 = vrot.slane %v2053, 2
    %v2064 = vsel %vm438, %v2063, %v2062
    %v2065 = vrot.slane %v2054, 1
    %v2066 = vsel %vm441, %v2065, %v2064
    %v2067 = vsel %vm444, %v2055, %v2066
    %v2068 = vrot.slane %v2056, 7
    %v2069 = vsel %vm447, %v2068, %v2067
    %v2070 = vrot.slane %v2057, 6
    %v2071 = vsel %vm450, %v2070, %v2069
    %v2072 = vpack.c.b16 %v2071, %v2071
    %2073 = vrot.lane.b32.xlu0 %v2072, 80
    %v2074 = vpop.permute.xlu0 %2073
    %v2076 = vsel %vm62, %v2074, 0
    %2078 = vmatprep.subr.bf16.mxu0 0
    %2079 = vmatpush1.bf16.msra.mxu0 %v146
    %2080 = vmatprep.subr.bf16.mxu0 0
    %2081 = vmatpush1.bf16.msra.mxu0 0
    %2082 = vmatprep.subr.bf16.mxu0 0
    %2083 = vmatpush1.bf16.msra.mxu0 0
    %2084 = vmatprep.subr.bf16.mxu0 0
    %2085 = vmatpush1.bf16.msra.mxu0 0
    %2086 = vmatprep.subr.bf16.mxu0 0
    %2087 = vmatpush1.bf16.msra.mxu0 0
    %2088 = vmatprep.subr.bf16.mxu0 0
    %2089 = vmatpush1.bf16.msra.mxu0 0
    %2090 = vmatprep.subr.bf16.mxu0 0
    %2091 = vmatpush1.bf16.msra.mxu0 0
    %2092 = vmatprep.subr.bf16.mxu0 0
    %2093 = vmatpush1.bf16.msra.mxu0 0
    %2094 = vmatprep.subr.bf16.mxu0 0
    %2095 = vmatpush1.bf16.msra.mxu0 0
    %2096 = vmatprep.subr.bf16.mxu0 0
    %2097 = vmatpush1.bf16.msra.mxu0 0
    %2098 = vmatprep.subr.bf16.mxu0 0
    %2099 = vmatpush1.bf16.msra.mxu0 0
    %2100 = vmatprep.subr.bf16.mxu0 0
    %2101 = vmatpush1.bf16.msra.mxu0 0
    %2102 = vmatprep.subr.bf16.mxu0 0
    %2103 = vmatpush1.bf16.msra.mxu0 0
    %2104 = vmatprep.subr.bf16.mxu0 0
    %2105 = vmatpush1.bf16.msra.mxu0 0
    %2106 = vmatprep.subr.bf16.mxu0 0
    %2107 = vmatpush1.bf16.msra.mxu0 0
    %2108 = vmatprep.subr.bf16.mxu0 0
    %2109 = vmatpush1.bf16.msra.mxu0 0
    %2110 = vmatprep.mubr.bf16.mxu0 0
    %2111 = vmatmul.mubr.bf16.gmra.mrb[0].mxu0 %v2076
    %v2112 = vpop.f32.mrb[0].mxu0
    %v2113 = vadd.f32 0.0, %v2112
    %v2114 = vpop.f32.mrb[0].mxu0
    %v2115 = vpop.f32.mrb[0].mxu0
    %v2116 = vpop.f32.mrb[0].mxu0
    %2117 = vdwg.mxu0
    %v2119 = vrot.slane %v2113, 2
    %v2120 = vrot.slane %v2113, 3
    %v2121 = vrot.slane %v2113, 4
    %v2122 = vrot.slane %v2113, 5
    %v2123 = vrot.slane %v2113, 6
    %v2124 = vrot.slane %v2113, 7
    %v2125 = vrot.slane %v2113, 1
    %v2134 = vadd.f32 %v110, %v2119
    %v2135 = vadd.f32 %v113, %v2120
    %v2136 = vadd.f32 %v118, %v2121
    %v2137 = vadd.f32 %v121, %v2122
    %v2138 = vadd.f32 %v126, %v2123
    %v2139 = vadd.f32 %v129, %v2124
    %v2140 = vadd.f32 %v134, %v2113
    %v2141 = vadd.f32 %v137, %v2125
    %v2142 = vxor.u32 %v2134, 2147483648
    %v2143 = vxor.u32 %v2135, 2147483648
    %v2144 = vxor.u32 %v2136, 2147483648
    %v2145 = vxor.u32 %v2137, 2147483648
    %v2146 = vxor.u32 %v2138, 2147483648
    %v2147 = vxor.u32 %v2139, 2147483648
    %v2148 = vxor.u32 %v2140, 2147483648
    %v2149 = vxor.u32 %v2141, 2147483648
    %v2150 = vmul.f32 %v2142, 1.442695
    %v2151 = vpow.pop %v2150
    %v2152 = vmul.f32 %v2143, 1.442695
    %v2153 = vpow.pop %v2152
    %v2154 = vmul.f32 %v2144, 1.442695
    %v2155 = vpow.pop %v2154
    %v2156 = vmul.f32 %v2145, 1.442695
    %v2157 = vpow.pop %v2156
    %v2158 = vmul.f32 %v2146, 1.442695
    %v2159 = vpow.pop %v2158
    %v2160 = vmul.f32 %v2147, 1.442695
    %v2161 = vpow.pop %v2160
    %v2162 = vmul.f32 %v2148, 1.442695
    %v2163 = vpow.pop %v2162
    %v2164 = vmul.f32 %v2149, 1.442695
    %v2165 = vpow.pop %v2164
    %v2166 = vadd.f32 %v2151, 1.0
    %v2167 = vadd.f32 %v2153, 1.0
    %v2168 = vadd.f32 %v2155, 1.0
    %v2169 = vadd.f32 %v2157, 1.0
    %v2170 = vadd.f32 %v2159, 1.0
    %v2171 = vadd.f32 %v2161, 1.0
    %v2172 = vadd.f32 %v2163, 1.0
    %v2173 = vadd.f32 %v2165, 1.0
    %v2174 = vrcp.pop %v2166
    %v2175 = vmul.f32 1.0, %v2174
    %v2176 = vrcp.pop %v2167
    %v2177 = vmul.f32 1.0, %v2176
    %v2178 = vrcp.pop %v2168
    %v2179 = vmul.f32 1.0, %v2178
    %v2180 = vrcp.pop %v2169
    %v2181 = vmul.f32 1.0, %v2180
    %v2182 = vrcp.pop %v2170
    %v2183 = vmul.f32 1.0, %v2182
    %v2184 = vrcp.pop %v2171
    %v2185 = vmul.f32 1.0, %v2184
    %v2186 = vrcp.pop %v2172
    %v2187 = vmul.f32 1.0, %v2186
    %v2188 = vrcp.pop %v2173
    %v2189 = vmul.f32 1.0, %v2188
    %v2190 = vtanh.pop %v2134
    %v2191 = vtanh.pop %v2135
    %v2192 = vtanh.pop %v2136
    %v2193 = vtanh.pop %v2137
    %v2194 = vtanh.pop %v2138
    %v2195 = vtanh.pop %v2139
    %v2196 = vtanh.pop %v2140
    %v2197 = vtanh.pop %v2141
    %v2206 = vrot.slane %v1978, 7
    %v2207 = vrot.slane %v1979, 7
    %v2208 = vrot.slane %v1980, 7
    %v2209 = vrot.slane %v1981, 7
    %v2210 = vrot.slane %v1982, 7
    %v2211 = vrot.slane %v1983, 7
    %v2212 = vrot.slane %v1984, 7
    %v2213 = vrot.slane %v1985, 7
    %v2222 = vmul.f32 %v2175, %v2206
    %v2223 = vmul.f32 %v2177, %v2207
    %v2224 = vmul.f32 %v2179, %v2208
    %v2225 = vmul.f32 %v2181, %v2209
    %v2226 = vmul.f32 %v2183, %v2210
    %v2227 = vmul.f32 %v2185, %v2211
    %v2228 = vmul.f32 %v2187, %v2212
    %v2229 = vmul.f32 %v2189, %v2213
    %2238 = vrot.lane.b32.xlu0 %v2190, 96
    %v2239 = vpop.permute.xlu0 %2238
    %2240 = vrot.lane.b32.xlu0 %v2191, 96
    %v2241 = vpop.permute.xlu0 %2240
    %2242 = vrot.lane.b32.xlu0 %v2192, 96
    %v2243 = vpop.permute.xlu0 %2242
    %2244 = vrot.lane.b32.xlu0 %v2193, 96
    %v2245 = vpop.permute.xlu0 %2244
    %2246 = vrot.lane.b32.xlu0 %v2194, 96
    %v2247 = vpop.permute.xlu0 %2246
    %2248 = vrot.lane.b32.xlu0 %v2195, 96
    %v2249 = vpop.permute.xlu0 %2248
    %2250 = vrot.lane.b32.xlu0 %v2196, 96
    %v2251 = vpop.permute.xlu0 %2250
    %2252 = vrot.lane.b32.xlu0 %v2197, 96
    %v2253 = vpop.permute.xlu0 %2252
    %v2262 = vmul.f32 %v2175, %v2239
    %v2263 = vmul.f32 %v2177, %v2241
    %v2264 = vmul.f32 %v2179, %v2243
    %v2265 = vmul.f32 %v2181, %v2245
    %v2266 = vmul.f32 %v2183, %v2247
    %v2267 = vmul.f32 %v2185, %v2249
    %v2268 = vmul.f32 %v2187, %v2251
    %v2269 = vmul.f32 %v2189, %v2253
    %2278 = vrot.lane.b32.xlu0 %v2262, 16
    %v2279 = vpop.permute.xlu0 %2278
    %2280 = vrot.lane.b32.xlu0 %v2263, 16
    %v2281 = vpop.permute.xlu0 %2280
    %2282 = vrot.lane.b32.xlu0 %v2264, 16
    %v2283 = vpop.permute.xlu0 %2282
    %2284 = vrot.lane.b32.xlu0 %v2265, 16
    %v2285 = vpop.permute.xlu0 %2284
    %2286 = vrot.lane.b32.xlu0 %v2266, 16
    %v2287 = vpop.permute.xlu0 %2286
    %2288 = vrot.lane.b32.xlu0 %v2267, 16
    %v2289 = vpop.permute.xlu0 %2288
    %2290 = vrot.lane.b32.xlu0 %v2268, 16
    %v2291 = vpop.permute.xlu0 %2290
    %2292 = vrot.lane.b32.xlu0 %v2269, 16
    %v2293 = vpop.permute.xlu0 %2292
    %v2302 = vadd.f32 %v2222, %v2279
    %v2303 = vadd.f32 %v2223, %v2281
    %v2304 = vadd.f32 %v2224, %v2283
    %v2305 = vadd.f32 %v2225, %v2285
    %v2306 = vadd.f32 %v2226, %v2287
    %v2307 = vadd.f32 %v2227, %v2289
    %v2308 = vadd.f32 %v2228, %v2291
    %v2309 = vadd.f32 %v2229, %v2293
    %v2310 = vtanh.pop %v2302
    %v2311 = vtanh.pop %v2303
    %v2312 = vtanh.pop %v2304
    %v2313 = vtanh.pop %v2305
    %v2314 = vtanh.pop %v2306
    %v2315 = vtanh.pop %v2307
    %v2316 = vtanh.pop %v2308
    %v2317 = vtanh.pop %v2309
    %2326 = vrot.lane.b32.xlu0 %v2310, 32
    %v2327 = vpop.permute.xlu0 %2326
    %2328 = vrot.lane.b32.xlu0 %v2311, 32
    %v2329 = vpop.permute.xlu0 %2328
    %2330 = vrot.lane.b32.xlu0 %v2312, 32
    %v2331 = vpop.permute.xlu0 %2330
    %2332 = vrot.lane.b32.xlu0 %v2313, 32
    %v2333 = vpop.permute.xlu0 %2332
    %2334 = vrot.lane.b32.xlu0 %v2314, 32
    %v2335 = vpop.permute.xlu0 %2334
    %2336 = vrot.lane.b32.xlu0 %v2315, 32
    %v2337 = vpop.permute.xlu0 %2336
    %2338 = vrot.lane.b32.xlu0 %v2316, 32
    %v2339 = vpop.permute.xlu0 %2338
    %2340 = vrot.lane.b32.xlu0 %v2317, 32
    %v2341 = vpop.permute.xlu0 %2340
    %v2350 = vmul.f32 %v2175, %v2327
    %v2351 = vmul.f32 %v2177, %v2329
    %v2352 = vmul.f32 %v2179, %v2331
    %v2353 = vmul.f32 %v2181, %v2333
    %v2354 = vmul.f32 %v2183, %v2335
    %v2355 = vmul.f32 %v2185, %v2337
    %v2356 = vmul.f32 %v2187, %v2339
    %v2357 = vmul.f32 %v2189, %v2341
    %v2358 = vpack.c.bf16 %v2350, %v2350
    %v2359 = vpack.c.bf16 %v2351, %v2351
    %v2360 = vpack.c.bf16 %v2352, %v2352
    %v2361 = vpack.c.bf16 %v2353, %v2353
    %v2362 = vpack.c.bf16 %v2354, %v2354
    %v2363 = vpack.c.bf16 %v2355, %v2355
    %v2364 = vpack.c.bf16 %v2356, %v2356
    %v2365 = vpack.c.bf16 %v2357, %v2357
    %v2374 = vunpack.c.l.b16 %v2358
    %v2375 = vunpack.c.l.b16 %v2359
    %v2376 = vunpack.c.l.b16 %v2360
    %v2377 = vunpack.c.l.b16 %v2361
    %v2378 = vunpack.c.l.b16 %v2362
    %v2379 = vunpack.c.l.b16 %v2363
    %v2380 = vunpack.c.l.b16 %v2364
    %v2381 = vunpack.c.l.b16 %v2365
    %v2382 = vrot.slane %v2374, 6
    %v2383 = vrot.slane %v2375, 5
    %v2384 = vsel %vm432, %v2383, %v2382
    %v2385 = vrot.slane %v2376, 4
    %v2386 = vsel %vm435, %v2385, %v2384
    %v2387 = vrot.slane %v2377, 3
    %v2388 = vsel %vm438, %v2387, %v2386
    %v2389 = vrot.slane %v2378, 2
    %v2390 = vsel %vm441, %v2389, %v2388
    %v2391 = vrot.slane %v2379, 1
    %v2392 = vsel %vm444, %v2391, %v2390
    %v2393 = vsel %vm447, %v2380, %v2392
    %v2394 = vrot.slane %v2381, 7
    %v2395 = vsel %vm450, %v2394, %v2393
    %v2396 = vpack.c.b16 %v2395, %v2395
    %2397 = vrot.lane.b32.xlu0 %v2396, 80
    %v2398 = vpop.permute.xlu0 %2397
    %v2400 = vsel %vm62, %v2398, 0
    %2402 = vmatprep.subr.bf16.mxu0 0
    %2403 = vmatpush1.bf16.msra.mxu0 %v146
    %2404 = vmatprep.subr.bf16.mxu0 0
    %2405 = vmatpush1.bf16.msra.mxu0 0
    %2406 = vmatprep.subr.bf16.mxu0 0
    %2407 = vmatpush1.bf16.msra.mxu0 0
    %2408 = vmatprep.subr.bf16.mxu0 0
    %2409 = vmatpush1.bf16.msra.mxu0 0
    %2410 = vmatprep.subr.bf16.mxu0 0
    %2411 = vmatpush1.bf16.msra.mxu0 0
    %2412 = vmatprep.subr.bf16.mxu0 0
    %2413 = vmatpush1.bf16.msra.mxu0 0
    %2414 = vmatprep.subr.bf16.mxu0 0
    %2415 = vmatpush1.bf16.msra.mxu0 0
    %2416 = vmatprep.subr.bf16.mxu0 0
    %2417 = vmatpush1.bf16.msra.mxu0 0
    %2418 = vmatprep.subr.bf16.mxu0 0
    %2419 = vmatpush1.bf16.msra.mxu0 0
    %2420 = vmatprep.subr.bf16.mxu0 0
    %2421 = vmatpush1.bf16.msra.mxu0 0
    %2422 = vmatprep.subr.bf16.mxu0 0
    %2423 = vmatpush1.bf16.msra.mxu0 0
    %2424 = vmatprep.subr.bf16.mxu0 0
    %2425 = vmatpush1.bf16.msra.mxu0 0
    %2426 = vmatprep.subr.bf16.mxu0 0
    %2427 = vmatpush1.bf16.msra.mxu0 0
    %2428 = vmatprep.subr.bf16.mxu0 0
    %2429 = vmatpush1.bf16.msra.mxu0 0
    %2430 = vmatprep.subr.bf16.mxu0 0
    %2431 = vmatpush1.bf16.msra.mxu0 0
    %2432 = vmatprep.subr.bf16.mxu0 0
    %2433 = vmatpush1.bf16.msra.mxu0 0
    %2434 = vmatprep.mubr.bf16.mxu0 0
    %2435 = vmatmul.mubr.bf16.gmra.mrb[0].mxu0 %v2400
    %v2436 = vpop.f32.mrb[0].mxu0
    %v2437 = vadd.f32 0.0, %v2436
    %v2438 = vpop.f32.mrb[0].mxu0
    %v2439 = vpop.f32.mrb[0].mxu0
    %v2440 = vpop.f32.mrb[0].mxu0
    %2441 = vdwg.mxu0
    %v2443 = vrot.slane %v2437, 1
    %v2444 = vrot.slane %v2437, 2
    %v2445 = vrot.slane %v2437, 3
    %v2446 = vrot.slane %v2437, 4
    %v2447 = vrot.slane %v2437, 5
    %v2448 = vrot.slane %v2437, 6
    %v2449 = vrot.slane %v2437, 7
    %v2458 = vadd.f32 %v110, %v2443
    %v2459 = vadd.f32 %v113, %v2444
    %v2460 = vadd.f32 %v118, %v2445
    %v2461 = vadd.f32 %v121, %v2446
    %v2462 = vadd.f32 %v126, %v2447
    %v2463 = vadd.f32 %v129, %v2448
    %v2464 = vadd.f32 %v134, %v2449
    %v2465 = vadd.f32 %v137, %v2437
    %v2466 = vxor.u32 %v2458, 2147483648
    %v2467 = vxor.u32 %v2459, 2147483648
    %v2468 = vxor.u32 %v2460, 2147483648
    %v2469 = vxor.u32 %v2461, 2147483648
    %v2470 = vxor.u32 %v2462, 2147483648
    %v2471 = vxor.u32 %v2463, 2147483648
    %v2472 = vxor.u32 %v2464, 2147483648
    %v2473 = vxor.u32 %v2465, 2147483648
    %v2474 = vmul.f32 %v2466, 1.442695
    %v2475 = vpow.pop %v2474
    %v2476 = vmul.f32 %v2467, 1.442695
    %v2477 = vpow.pop %v2476
    %v2478 = vmul.f32 %v2468, 1.442695
    %v2479 = vpow.pop %v2478
    %v2480 = vmul.f32 %v2469, 1.442695
    %v2481 = vpow.pop %v2480
    %v2482 = vmul.f32 %v2470, 1.442695
    %v2483 = vpow.pop %v2482
    %v2484 = vmul.f32 %v2471, 1.442695
    %v2485 = vpow.pop %v2484
    %v2486 = vmul.f32 %v2472, 1.442695
    %v2487 = vpow.pop %v2486
    %v2488 = vmul.f32 %v2473, 1.442695
    %v2489 = vpow.pop %v2488
    %v2490 = vadd.f32 %v2475, 1.0
    %v2491 = vadd.f32 %v2477, 1.0
    %v2492 = vadd.f32 %v2479, 1.0
    %v2493 = vadd.f32 %v2481, 1.0
    %v2494 = vadd.f32 %v2483, 1.0
    %v2495 = vadd.f32 %v2485, 1.0
    %v2496 = vadd.f32 %v2487, 1.0
    %v2497 = vadd.f32 %v2489, 1.0
    %v2498 = vrcp.pop %v2490
    %v2499 = vmul.f32 1.0, %v2498
    %v2500 = vrcp.pop %v2491
    %v2501 = vmul.f32 1.0, %v2500
    %v2502 = vrcp.pop %v2492
    %v2503 = vmul.f32 1.0, %v2502
    %v2504 = vrcp.pop %v2493
    %v2505 = vmul.f32 1.0, %v2504
    %v2506 = vrcp.pop %v2494
    %v2507 = vmul.f32 1.0, %v2506
    %v2508 = vrcp.pop %v2495
    %v2509 = vmul.f32 1.0, %v2508
    %v2510 = vrcp.pop %v2496
    %v2511 = vmul.f32 1.0, %v2510
    %v2512 = vrcp.pop %v2497
    %v2513 = vmul.f32 1.0, %v2512
    %v2514 = vtanh.pop %v2458
    %v2515 = vtanh.pop %v2459
    %v2516 = vtanh.pop %v2460
    %v2517 = vtanh.pop %v2461
    %v2518 = vtanh.pop %v2462
    %v2519 = vtanh.pop %v2463
    %v2520 = vtanh.pop %v2464
    %v2521 = vtanh.pop %v2465
    %v2530 = vrot.slane %v2302, 7
    %v2531 = vrot.slane %v2303, 7
    %v2532 = vrot.slane %v2304, 7
    %v2533 = vrot.slane %v2305, 7
    %v2534 = vrot.slane %v2306, 7
    %v2535 = vrot.slane %v2307, 7
    %v2536 = vrot.slane %v2308, 7
    %v2537 = vrot.slane %v2309, 7
    %v2546 = vmul.f32 %v2499, %v2530
    %v2547 = vmul.f32 %v2501, %v2531
    %v2548 = vmul.f32 %v2503, %v2532
    %v2549 = vmul.f32 %v2505, %v2533
    %v2550 = vmul.f32 %v2507, %v2534
    %v2551 = vmul.f32 %v2509, %v2535
    %v2552 = vmul.f32 %v2511, %v2536
    %v2553 = vmul.f32 %v2513, %v2537
    %2562 = vrot.lane.b32.xlu0 %v2514, 96
    %v2563 = vpop.permute.xlu0 %2562
    %2564 = vrot.lane.b32.xlu0 %v2515, 96
    %v2565 = vpop.permute.xlu0 %2564
    %2566 = vrot.lane.b32.xlu0 %v2516, 96
    %v2567 = vpop.permute.xlu0 %2566
    %2568 = vrot.lane.b32.xlu0 %v2517, 96
    %v2569 = vpop.permute.xlu0 %2568
    %2570 = vrot.lane.b32.xlu0 %v2518, 96
    %v2571 = vpop.permute.xlu0 %2570
    %2572 = vrot.lane.b32.xlu0 %v2519, 96
    %v2573 = vpop.permute.xlu0 %2572
    %2574 = vrot.lane.b32.xlu0 %v2520, 96
    %v2575 = vpop.permute.xlu0 %2574
    %2576 = vrot.lane.b32.xlu0 %v2521, 96
    %v2577 = vpop.permute.xlu0 %2576
    %v2586 = vmul.f32 %v2499, %v2563
    %v2587 = vmul.f32 %v2501, %v2565
    %v2588 = vmul.f32 %v2503, %v2567
    %v2589 = vmul.f32 %v2505, %v2569
    %v2590 = vmul.f32 %v2507, %v2571
    %v2591 = vmul.f32 %v2509, %v2573
    %v2592 = vmul.f32 %v2511, %v2575
    %v2593 = vmul.f32 %v2513, %v2577
    %2602 = vrot.lane.b32.xlu0 %v2586, 16
    %v2603 = vpop.permute.xlu0 %2602
    %2604 = vrot.lane.b32.xlu0 %v2587, 16
    %v2605 = vpop.permute.xlu0 %2604
    %2606 = vrot.lane.b32.xlu0 %v2588, 16
    %v2607 = vpop.permute.xlu0 %2606
    %2608 = vrot.lane.b32.xlu0 %v2589, 16
    %v2609 = vpop.permute.xlu0 %2608
    %2610 = vrot.lane.b32.xlu0 %v2590, 16
    %v2611 = vpop.permute.xlu0 %2610
    %2612 = vrot.lane.b32.xlu0 %v2591, 16
    %v2613 = vpop.permute.xlu0 %2612
    %2614 = vrot.lane.b32.xlu0 %v2592, 16
    %v2615 = vpop.permute.xlu0 %2614
    %2616 = vrot.lane.b32.xlu0 %v2593, 16
    %v2617 = vpop.permute.xlu0 %2616
    %v2626 = vadd.f32 %v2546, %v2603
    %v2627 = vadd.f32 %v2547, %v2605
    %v2628 = vadd.f32 %v2548, %v2607
    %v2629 = vadd.f32 %v2549, %v2609
    %v2630 = vadd.f32 %v2550, %v2611
    %v2631 = vadd.f32 %v2551, %v2613
    %v2632 = vadd.f32 %v2552, %v2615
    %v2633 = vadd.f32 %v2553, %v2617
    %v2634 = vtanh.pop %v2626
    %v2635 = vtanh.pop %v2627
    %v2636 = vtanh.pop %v2628
    %v2637 = vtanh.pop %v2629
    %v2638 = vtanh.pop %v2630
    %v2639 = vtanh.pop %v2631
    %v2640 = vtanh.pop %v2632
    %v2641 = vtanh.pop %v2633
    %2650 = vrot.lane.b32.xlu0 %v2634, 32
    %v2651 = vpop.permute.xlu0 %2650
    %2652 = vrot.lane.b32.xlu0 %v2635, 32
    %v2653 = vpop.permute.xlu0 %2652
    %2654 = vrot.lane.b32.xlu0 %v2636, 32
    %v2655 = vpop.permute.xlu0 %2654
    %2656 = vrot.lane.b32.xlu0 %v2637, 32
    %v2657 = vpop.permute.xlu0 %2656
    %2658 = vrot.lane.b32.xlu0 %v2638, 32
    %v2659 = vpop.permute.xlu0 %2658
    %2660 = vrot.lane.b32.xlu0 %v2639, 32
    %v2661 = vpop.permute.xlu0 %2660
    %2662 = vrot.lane.b32.xlu0 %v2640, 32
    %v2663 = vpop.permute.xlu0 %2662
    %2664 = vrot.lane.b32.xlu0 %v2641, 32
    %v2665 = vpop.permute.xlu0 %2664
    %v2674 = vmul.f32 %v2499, %v2651
    %v2675 = vmul.f32 %v2501, %v2653
    %v2676 = vmul.f32 %v2503, %v2655
    %v2677 = vmul.f32 %v2505, %v2657
    %v2678 = vmul.f32 %v2507, %v2659
    %v2679 = vmul.f32 %v2509, %v2661
    %v2680 = vmul.f32 %v2511, %v2663
    %v2681 = vmul.f32 %v2513, %v2665
    %v2682 = vxor.u32 %v110, 2147483648
    %v2683 = vxor.u32 %v113, 2147483648
    %v2684 = vxor.u32 %v118, 2147483648
    %v2685 = vxor.u32 %v121, 2147483648
    %v2686 = vxor.u32 %v126, 2147483648
    %v2687 = vxor.u32 %v129, 2147483648
    %v2688 = vxor.u32 %v134, 2147483648
    %v2689 = vxor.u32 %v137, 2147483648
    %v2690 = vmul.f32 %v2682, 1.442695
    %v2691 = vpow.pop %v2690
    %v2692 = vmul.f32 %v2683, 1.442695
    %v2693 = vpow.pop %v2692
    %v2694 = vmul.f32 %v2684, 1.442695
    %v2695 = vpow.pop %v2694
    %v2696 = vmul.f32 %v2685, 1.442695
    %v2697 = vpow.pop %v2696
    %v2698 = vmul.f32 %v2686, 1.442695
    %v2699 = vpow.pop %v2698
    %v2700 = vmul.f32 %v2687, 1.442695
    %v2701 = vpow.pop %v2700
    %v2702 = vmul.f32 %v2688, 1.442695
    %v2703 = vpow.pop %v2702
    %v2704 = vmul.f32 %v2689, 1.442695
    %v2705 = vpow.pop %v2704
    %v2706 = vadd.f32 %v2691, 1.0
    %v2707 = vadd.f32 %v2693, 1.0
    %v2708 = vadd.f32 %v2695, 1.0
    %v2709 = vadd.f32 %v2697, 1.0
    %v2710 = vadd.f32 %v2699, 1.0
    %v2711 = vadd.f32 %v2701, 1.0
    %v2712 = vadd.f32 %v2703, 1.0
    %v2713 = vadd.f32 %v2705, 1.0
    %v2714 = vrcp.pop %v2706
    %v2715 = vmul.f32 1.0, %v2714
    %v2716 = vrcp.pop %v2707
    %v2717 = vmul.f32 1.0, %v2716
    %v2718 = vrcp.pop %v2708
    %v2719 = vmul.f32 1.0, %v2718
    %v2720 = vrcp.pop %v2709
    %v2721 = vmul.f32 1.0, %v2720
    %v2722 = vrcp.pop %v2710
    %v2723 = vmul.f32 1.0, %v2722
    %v2724 = vrcp.pop %v2711
    %v2725 = vmul.f32 1.0, %v2724
    %v2726 = vrcp.pop %v2712
    %v2727 = vmul.f32 1.0, %v2726
    %v2728 = vrcp.pop %v2713
    %v2729 = vmul.f32 1.0, %v2728
    %v2730 = vtanh.pop %v110
    %v2731 = vtanh.pop %v113
    %v2732 = vtanh.pop %v118
    %v2733 = vtanh.pop %v121
    %v2734 = vtanh.pop %v126
    %v2735 = vtanh.pop %v129
    %v2736 = vtanh.pop %v134
    %v2737 = vtanh.pop %v137
    %2746 = vrot.lane.b32.xlu0 %v2730, 96
    %v2747 = vpop.permute.xlu0 %2746
    %2748 = vrot.lane.b32.xlu0 %v2731, 96
    %v2749 = vpop.permute.xlu0 %2748
    %2750 = vrot.lane.b32.xlu0 %v2732, 96
    %v2751 = vpop.permute.xlu0 %2750
    %2752 = vrot.lane.b32.xlu0 %v2733, 96
    %v2753 = vpop.permute.xlu0 %2752
    %2754 = vrot.lane.b32.xlu0 %v2734, 96
    %v2755 = vpop.permute.xlu0 %2754
    %2756 = vrot.lane.b32.xlu0 %v2735, 96
    %v2757 = vpop.permute.xlu0 %2756
    %2758 = vrot.lane.b32.xlu0 %v2736, 96
    %v2759 = vpop.permute.xlu0 %2758
    %2760 = vrot.lane.b32.xlu0 %v2737, 96
    %v2761 = vpop.permute.xlu0 %2760
    %v2770 = vmul.f32 %v2715, %v2747
    %v2771 = vmul.f32 %v2717, %v2749
    %v2772 = vmul.f32 %v2719, %v2751
    %v2773 = vmul.f32 %v2721, %v2753
    %v2774 = vmul.f32 %v2723, %v2755
    %v2775 = vmul.f32 %v2725, %v2757
    %v2776 = vmul.f32 %v2727, %v2759
    %v2777 = vmul.f32 %v2729, %v2761
    %v2778 = vtanh.pop %v2770
    %v2779 = vtanh.pop %v2771
    %v2780 = vtanh.pop %v2772
    %v2781 = vtanh.pop %v2773
    %v2782 = vtanh.pop %v2774
    %v2783 = vtanh.pop %v2775
    %v2784 = vtanh.pop %v2776
    %v2785 = vtanh.pop %v2777
    %2794 = vrot.lane.b32.xlu0 %v2778, 48
    %v2795 = vpop.permute.xlu0 %2794
    %2796 = vrot.lane.b32.xlu0 %v2779, 48
    %v2797 = vpop.permute.xlu0 %2796
    %2798 = vrot.lane.b32.xlu0 %v2780, 48
    %v2799 = vpop.permute.xlu0 %2798
    %2800 = vrot.lane.b32.xlu0 %v2781, 48
    %v2801 = vpop.permute.xlu0 %2800
    %2802 = vrot.lane.b32.xlu0 %v2782, 48
    %v2803 = vpop.permute.xlu0 %2802
    %2804 = vrot.lane.b32.xlu0 %v2783, 48
    %v2805 = vpop.permute.xlu0 %2804
    %2806 = vrot.lane.b32.xlu0 %v2784, 48
    %v2807 = vpop.permute.xlu0 %2806
    %2808 = vrot.lane.b32.xlu0 %v2785, 48
    %v2809 = vpop.permute.xlu0 %2808
    %v2818 = vmul.f32 %v2715, %v2795
    %v2819 = vmul.f32 %v2717, %v2797
    %v2820 = vmul.f32 %v2719, %v2799
    %v2821 = vmul.f32 %v2721, %v2801
    %v2822 = vmul.f32 %v2723, %v2803
    %v2823 = vmul.f32 %v2725, %v2805
    %v2824 = vmul.f32 %v2727, %v2807
    %v2825 = vmul.f32 %v2729, %v2809
    %v2834 = vrot.slane %v2675, 7
    %v2835 = vrot.slane %v2676, 6
    %v2836 = vsel %vm432, %v2835, %v2834
    %v2837 = vrot.slane %v2677, 5
    %v2838 = vsel %vm435, %v2837, %v2836
    %v2839 = vrot.slane %v2678, 4
    %v2840 = vsel %vm438, %v2839, %v2838
    %v2841 = vrot.slane %v2679, 3
    %v2842 = vsel %vm441, %v2841, %v2840
    %v2843 = vrot.slane %v2680, 2
    %v2844 = vsel %vm444, %v2843, %v2842
    %v2845 = vrot.slane %v2681, 1
    %v2846 = vsel %vm447, %v2845, %v2844
    %2847 = vrot.lane.b32.xlu0 %v2674, 80
    %v2848 = vpop.permute.xlu0 %2847
    %2849 = vrot.lane.b32.xlu0 %v2846, 80
    %v2850 = vpop.permute.xlu0 %2849
    %v2861 = vrot.slane %v2819, 7
    %v2862 = vrot.slane %v2820, 6
    %v2863 = vsel %vm432, %v2862, %v2861
    %v2864 = vrot.slane %v2821, 5
    %v2865 = vsel %vm435, %v2864, %v2863
    %v2866 = vrot.slane %v2822, 4
    %v2867 = vsel %vm438, %v2866, %v2865
    %v2868 = vrot.slane %v2823, 3
    %v2869 = vsel %vm441, %v2868, %v2867
    %v2870 = vrot.slane %v2824, 2
    %v2871 = vsel %vm444, %v2870, %v2869
    %v2872 = vrot.slane %v2825, 1
    %v2873 = vsel %vm447, %v2872, %v2871
    %2874 = vrot.lane.b32.xlu0 %v2818, 32
    %v2875 = vpop.permute.xlu0 %2874
    %2876 = vrot.lane.b32.xlu0 %v2873, 32
    %v2877 = vpop.permute.xlu0 %2876
    %v2880 = vsel %vm62, %v2848, %v2875
    %v2881 = vsel %vm62, %v2850, %v2877
    %vm2882 = vcmask 261127
    %2883 = vst.msk [vmem:[#allocation2 - $0x7] sm:$0x80] %vm2882, %v2880
    %vm2884 = vcmask 260096
    %2885 = vst.msk [vmem:[#allocation2 + $0x1] sm:$0x7f] %vm2884, %v2881
    // Predicated region
    $region18: #{tpu_custom_call.1} parent=1 // pred_check
      _
    $region19: #{tpu_custom_call.1} parent=1 // pred_check_branch
      %2887 = sbr.rel (0) target = $region21
    $region20: #{tpu_custom_call.1} parent=1 // pred_region
      %s2889 = ssub.s32 128, 128
      %2890 = vsyncadd [#allocation3], %s2889
      %s2892 = sshll.u32 [#allocation2], 4
      %s2893 = int_to_ptr.vmem [resolvable:$true] %s2892
      %2895 = dma.vmem_to_hbm [thread:$0]  %s2893, 128, %s4, [#allocation3]
    $region21: #{tpu_custom_call.1} parent=1 // pred_fallthru
      _
    // Predicated region
    $region22: #{tpu_custom_call.1} parent=1 // pred_check
      _
    $region23: #{tpu_custom_call.1} parent=1 // pred_check_branch
      %2897 = sbr.rel (0) target = $region25
    $region24: #{tpu_custom_call.1} parent=1 // pred_region
      %2898 = dma.done [#allocation3], 128
    $region25: #{tpu_custom_call.1} parent=1 // pred_fallthru
      _
    %2899 = vsyncpa [#allocation3], 1

</llo_original>
